<compile_context>
chip_gen: v5e
topology: v5e:2x2
jax: 0.10.0
libtpu: 0.0.40
codegen_flags: <defaults>
</compile_context>

<pallas_src>
import jax
import jax.numpy as jnp
from jax.experimental import pallas as pl
from jax.experimental.pallas import tpu as pltpu


def ae_kernel(x_ref, w1_ref, b1_ref, w2_ref, b2_ref,
              w3_ref, b3_ref, w4_ref, b4_ref, out_ref):
    # One batch tile per grid step; all (bf16) weights are resident in VMEM.
    x = x_ref[...].astype(jnp.bfloat16)

    # encoder: Linear -> ReLU -> Linear -> ReLU  (f32 accumulate + f32 epilogue)
    h = jnp.maximum(
        jnp.dot(x, w1_ref[...], preferred_element_type=jnp.float32)
        + b1_ref[...], 0.0)
    h = jnp.maximum(
        jnp.dot(h.astype(jnp.bfloat16), w2_ref[...],
                preferred_element_type=jnp.float32) + b2_ref[...], 0.0)

    # decoder: Linear -> ReLU -> Linear
    h = jnp.maximum(
        jnp.dot(h.astype(jnp.bfloat16), w3_ref[...],
                preferred_element_type=jnp.float32) + b3_ref[...], 0.0)
    y = jnp.dot(h.astype(jnp.bfloat16), w4_ref[...],
                preferred_element_type=jnp.float32) + b4_ref[...]

    out_ref[...] = y.astype(out_ref.dtype)


def ae_forward(x, params, *, tb=256):
    """x: (B, n) float32.  params: dict of w1..w4 (in,out) and b1..b4 ((1,out))."""
    B, n = x.shape
    H = params["w1"].shape[1]  # 128

    # bf16 weights for the MXU; biases stay f32 for the epilogue math.
    w1 = params["w1"].astype(jnp.bfloat16)
    w2 = params["w2"].astype(jnp.bfloat16)
    w3 = params["w3"].astype(jnp.bfloat16)
    w4 = params["w4"].astype(jnp.bfloat16)
    b1, b2, b3, b4 = params["b1"], params["b2"], params["b3"], params["b4"]

    # Pad ragged batches up to a multiple of the batch tile.
    n_tiles = pl.cdiv(B, tb)
    b_pad = n_tiles * tb
    xp = x if b_pad == B else jnp.pad(x, ((0, b_pad - B), (0, 0)))

    # Constant index_map => block never changes => weights/biases stay resident.
    full = lambda shape: pl.BlockSpec(shape, lambda i: (0, 0))

    out = pl.pallas_call(
        ae_kernel,
        out_shape=jax.ShapeDtypeStruct((b_pad, n), x.dtype),
        grid_spec=pltpu.PrefetchScalarGridSpec(
            num_scalar_prefetch=0,
            grid=(n_tiles,),
            in_specs=[
                pl.BlockSpec((tb, n), lambda i: (i, 0)),   # x tile
                full((n, H)), full((1, H)),                # w1, b1
                full((H, H)), full((1, H)),                # w2, b2
                full((H, H)), full((1, H)),                # w3, b3
                full((H, n)), full((1, n)),                # w4, b4
            ],
            out_specs=pl.BlockSpec((tb, n), lambda i: (i, 0)),
        ),
        compiler_params=pltpu.CompilerParams(
            dimension_semantics=("parallel",)),
    )(xp, w1, b1, w2, b2, w3, b3, w4, b4)

    return out if b_pad == B else out[:B]


def init_params(key, n, hidden=128):
    """Deterministic init mimicking nn.Linear's uniform(-1/sqrt(fan_in), ...)."""
    ks = jax.random.split(key, 8)

    def linear(kw, kb, fan_in, fan_out):
        bound = 1.0 / jnp.sqrt(fan_in)
        w = jax.random.uniform(kw, (fan_in, fan_out), jnp.float32, -bound, bound)
        b = jax.random.uniform(kb, (1, fan_out), jnp.float32, -bound, bound)
        return w, b

    w1, b1 = linear(ks[0], ks[1], n, hidden)
    w2, b2 = linear(ks[2], ks[3], hidden, hidden)
    w3, b3 = linear(ks[4], ks[5], hidden, hidden)
    w4, b4 = linear(ks[6], ks[7], hidden, n)
    return dict(w1=w1, b1=b1, w2=w2, b2=b2, w3=w3, b3=b3, w4=w4, b4=b4)


def ae_reference(x, p):
    """Plain-JAX reference with the same bf16-matmul / f32-accumulate math."""
    bf = lambda a: a.astype(jnp.bfloat16)
    h = jnp.maximum(
        jnp.dot(bf(x), bf(p["w1"]), preferred_element_type=jnp.float32)
        + p["b1"], 0.0)
    h = jnp.maximum(
        jnp.dot(bf(h), bf(p["w2"]), preferred_element_type=jnp.float32)
        + p["b2"], 0.0)
    h = jnp.maximum(
        jnp.dot(bf(h), bf(p["w3"]), preferred_element_type=jnp.float32)
        + p["b3"], 0.0)
    return jnp.dot(bf(h), bf(p["w4"]), preferred_element_type=jnp.float32) + p["b4"]


if __name__ == "__main__":
    key = jax.random.PRNGKey(0)
    k_x, k_p = jax.random.split(key)

    # Ragged batch (384 % 256 != 0) exercises the pad-and-slice path while
    # still giving a 2-step parallel grid (both v7x TensorCores busy).
    B, n = 384, 256
    x = jax.random.normal(k_x, (B, n), jnp.float32)
    params = init_params(k_p, n)

    out = jax.block_until_ready(ae_forward(x, params, tb=256))

    ref = ae_reference(x, params)
    assert out.shape == (B, n)
    # bf16 matmul operands (f32 accumulation) => slightly looser tolerance than
    # a pure-f32 forward pass would need.
    assert jnp.allclose(out, ref, atol=2e-2, rtol=2e-2), "mismatch vs reference"

    print("KERNEL_OK")
</pallas_src>

<mosaic_0001>
module attributes {stable_mosaic.version = 11 : i64} {
  func.func @ae_kernel(%arg0: i32, %arg1: memref<256x256xf32, #tpu.memory_space<vmem>>, %arg2: memref<256x128xbf16, #tpu.memory_space<vmem>>, %arg3: memref<1x128xf32, #tpu.memory_space<vmem>>, %arg4: memref<128x128xbf16, #tpu.memory_space<vmem>>, %arg5: memref<1x128xf32, #tpu.memory_space<vmem>>, %arg6: memref<128x128xbf16, #tpu.memory_space<vmem>>, %arg7: memref<1x128xf32, #tpu.memory_space<vmem>>, %arg8: memref<128x256xbf16, #tpu.memory_space<vmem>>, %arg9: memref<1x256xf32, #tpu.memory_space<vmem>>, %arg10: memref<256x256xf32, #tpu.memory_space<vmem>>) attributes {dimension_semantics = [#tpu.dimension_semantics<parallel>], iteration_bounds = array<i64: 2>, scalar_prefetch = 0 : i64, scratch_operands = 0 : i64, tpu.core_type = #tpu.core_type<tc>, window_params = [{transform_indices = @transform_0, window_bounds = array<i64: 256, 256>}, {pipeline_mode = #tpu.pipeline_mode<synchronous>, transform_indices = @transform_1, window_bounds = array<i64: 256, 128>}, {pipeline_mode = #tpu.pipeline_mode<synchronous>, transform_indices = @transform_2, window_bounds = array<i64: 1, 128>}, {pipeline_mode = #tpu.pipeline_mode<synchronous>, transform_indices = @transform_3, window_bounds = array<i64: 128, 128>}, {pipeline_mode = #tpu.pipeline_mode<synchronous>, transform_indices = @transform_4, window_bounds = array<i64: 1, 128>}, {pipeline_mode = #tpu.pipeline_mode<synchronous>, transform_indices = @transform_5, window_bounds = array<i64: 128, 128>}, {pipeline_mode = #tpu.pipeline_mode<synchronous>, transform_indices = @transform_6, window_bounds = array<i64: 1, 128>}, {pipeline_mode = #tpu.pipeline_mode<synchronous>, transform_indices = @transform_7, window_bounds = array<i64: 128, 256>}, {pipeline_mode = #tpu.pipeline_mode<synchronous>, transform_indices = @transform_8, window_bounds = array<i64: 1, 256>}, {transform_indices = @transform_9, window_bounds = array<i64: 256, 256>}]} {
    %c0 = arith.constant 0 : index
    %c0_0 = arith.constant 0 : index
    %0 = vector.load %arg1[%c0, %c0_0] : memref<256x256xf32, #tpu.memory_space<vmem>>, vector<256x256xf32>
    %1 = arith.truncf %0 : vector<256x256xf32> to vector<256x256xbf16>
    %c0_1 = arith.constant 0 : index
    %c0_2 = arith.constant 0 : index
    %2 = vector.load %arg2[%c0_1, %c0_2] : memref<256x128xbf16, #tpu.memory_space<vmem>>, vector<256x128xbf16>
    %cst = arith.constant dense<0.000000e+00> : vector<256x128xf32>
    %3 = tpu.matmul %1, %2, %cst {dimension_numbers = #tpu.dot_dimension_numbers<[1], [0], [0], [1], [0, 0, 1, 1], [], []>} : vector<256x256xbf16>, vector<256x128xbf16>, vector<256x128xf32> -> vector<256x128xf32>
    %c0_3 = arith.constant 0 : index
    %c0_4 = arith.constant 0 : index
    %4 = vector.load %arg3[%c0_3, %c0_4] : memref<1x128xf32, #tpu.memory_space<vmem>>, vector<1x128xf32>
    %5 = vector.broadcast %4 : vector<1x128xf32> to vector<256x128xf32>
    %6 = arith.addf %3, %5 : vector<256x128xf32>
    %cst_5 = arith.constant 0.000000e+00 : f32
    %7 = vector.broadcast %cst_5 : f32 to vector<256x128xf32>
    %8 = arith.maximumf %6, %7 : vector<256x128xf32>
    %9 = arith.truncf %8 : vector<256x128xf32> to vector<256x128xbf16>
    %c0_6 = arith.constant 0 : index
    %c0_7 = arith.constant 0 : index
    %10 = vector.load %arg4[%c0_6, %c0_7] : memref<128x128xbf16, #tpu.memory_space<vmem>>, vector<128x128xbf16>
    %cst_8 = arith.constant dense<0.000000e+00> : vector<256x128xf32>
    %11 = tpu.matmul %9, %10, %cst_8 {dimension_numbers = #tpu.dot_dimension_numbers<[1], [0], [0], [1], [0, 0, 1, 1], [], []>} : vector<256x128xbf16>, vector<128x128xbf16>, vector<256x128xf32> -> vector<256x128xf32>
    %c0_9 = arith.constant 0 : index
    %c0_10 = arith.constant 0 : index
    %12 = vector.load %arg5[%c0_9, %c0_10] : memref<1x128xf32, #tpu.memory_space<vmem>>, vector<1x128xf32>
    %13 = vector.broadcast %12 : vector<1x128xf32> to vector<256x128xf32>
    %14 = arith.addf %11, %13 : vector<256x128xf32>
    %cst_11 = arith.constant 0.000000e+00 : f32
    %15 = vector.broadcast %cst_11 : f32 to vector<256x128xf32>
    %16 = arith.maximumf %14, %15 : vector<256x128xf32>
    %17 = arith.truncf %16 : vector<256x128xf32> to vector<256x128xbf16>
    %c0_12 = arith.constant 0 : index
    %c0_13 = arith.constant 0 : index
    %18 = vector.load %arg6[%c0_12, %c0_13] : memref<128x128xbf16, #tpu.memory_space<vmem>>, vector<128x128xbf16>
    %cst_14 = arith.constant dense<0.000000e+00> : vector<256x128xf32>
    %19 = tpu.matmul %17, %18, %cst_14 {dimension_numbers = #tpu.dot_dimension_numbers<[1], [0], [0], [1], [0, 0, 1, 1], [], []>} : vector<256x128xbf16>, vector<128x128xbf16>, vector<256x128xf32> -> vector<256x128xf32>
    %c0_15 = arith.constant 0 : index
    %c0_16 = arith.constant 0 : index
    %20 = vector.load %arg7[%c0_15, %c0_16] : memref<1x128xf32, #tpu.memory_space<vmem>>, vector<1x128xf32>
    %21 = vector.broadcast %20 : vector<1x128xf32> to vector<256x128xf32>
    %22 = arith.addf %19, %21 : vector<256x128xf32>
    %cst_17 = arith.constant 0.000000e+00 : f32
    %23 = vector.broadcast %cst_17 : f32 to vector<256x128xf32>
    %24 = arith.maximumf %22, %23 : vector<256x128xf32>
    %25 = arith.truncf %24 : vector<256x128xf32> to vector<256x128xbf16>
    %c0_18 = arith.constant 0 : index
    %c0_19 = arith.constant 0 : index
    %26 = vector.load %arg8[%c0_18, %c0_19] : memref<128x256xbf16, #tpu.memory_space<vmem>>, vector<128x256xbf16>
    %cst_20 = arith.constant dense<0.000000e+00> : vector<256x256xf32>
    %27 = tpu.matmul %25, %26, %cst_20 {dimension_numbers = #tpu.dot_dimension_numbers<[1], [0], [0], [1], [0, 0, 1, 1], [], []>} : vector<256x128xbf16>, vector<128x256xbf16>, vector<256x256xf32> -> vector<256x256xf32>
    %c0_21 = arith.constant 0 : index
    %c0_22 = arith.constant 0 : index
    %28 = vector.load %arg9[%c0_21, %c0_22] : memref<1x256xf32, #tpu.memory_space<vmem>>, vector<1x256xf32>
    %29 = vector.broadcast %28 : vector<1x256xf32> to vector<256x256xf32>
    %30 = arith.addf %27, %29 : vector<256x256xf32>
    %c0_23 = arith.constant 0 : index
    %c0_24 = arith.constant 0 : index
    %31 = vector.load %arg10[%c0_23, %c0_24] : memref<256x256xf32, #tpu.memory_space<vmem>>, vector<256x256xf32>
    tpu.vector_store %arg10[%c0_23, %c0_24], %30 {strides = array<i32>} : memref<256x256xf32, #tpu.memory_space<vmem>>, vector<256x256xf32>,
    return
  }
  func.func @transform_0(%arg0: i32) -> (i32, i32) {
    %c0_i32 = arith.constant 0 : i32
    %c0_i32_0 = arith.constant 0 : i32
    return %arg0, %c0_i32 : i32, i32
  }
  func.func @transform_1(%arg0: i32) -> (i32, i32) {
    %c0_i32 = arith.constant 0 : i32
    %c0_i32_0 = arith.constant 0 : i32
    %c0_i32_1 = arith.constant 0 : i32
    return %c0_i32, %c0_i32_0 : i32, i32
  }
  func.func @transform_2(%arg0: i32) -> (i32, i32) {
    %c0_i32 = arith.constant 0 : i32
    %c0_i32_0 = arith.constant 0 : i32
    %c0_i32_1 = arith.constant 0 : i32
    return %c0_i32, %c0_i32_0 : i32, i32
  }
  func.func @transform_3(%arg0: i32) -> (i32, i32) {
    %c0_i32 = arith.constant 0 : i32
    %c0_i32_0 = arith.constant 0 : i32
    %c0_i32_1 = arith.constant 0 : i32
    return %c0_i32, %c0_i32_0 : i32, i32
  }
  func.func @transform_4(%arg0: i32) -> (i32, i32) {
    %c0_i32 = arith.constant 0 : i32
    %c0_i32_0 = arith.constant 0 : i32
    %c0_i32_1 = arith.constant 0 : i32
    return %c0_i32, %c0_i32_0 : i32, i32
  }
  func.func @transform_5(%arg0: i32) -> (i32, i32) {
    %c0_i32 = arith.constant 0 : i32
    %c0_i32_0 = arith.constant 0 : i32
    %c0_i32_1 = arith.constant 0 : i32
    return %c0_i32, %c0_i32_0 : i32, i32
  }
  func.func @transform_6(%arg0: i32) -> (i32, i32) {
    %c0_i32 = arith.constant 0 : i32
    %c0_i32_0 = arith.constant 0 : i32
    %c0_i32_1 = arith.constant 0 : i32
    return %c0_i32, %c0_i32_0 : i32, i32
  }
  func.func @transform_7(%arg0: i32) -> (i32, i32) {
    %c0_i32 = arith.constant 0 : i32
    %c0_i32_0 = arith.constant 0 : i32
    %c0_i32_1 = arith.constant 0 : i32
    return %c0_i32, %c0_i32_0 : i32, i32
  }
  func.func @transform_8(%arg0: i32) -> (i32, i32) {
    %c0_i32 = arith.constant 0 : i32
    %c0_i32_0 = arith.constant 0 : i32
    %c0_i32_1 = arith.constant 0 : i32
    return %c0_i32, %c0_i32_0 : i32, i32
  }
  func.func @transform_9(%arg0: i32) -> (i32, i32) {
    %c0_i32 = arith.constant 0 : i32
    %c0_i32_0 = arith.constant 0 : i32
    return %arg0, %c0_i32 : i32, i32
  }
}

</mosaic_0001>

<llo_original>
// kernel: tpu_custom_call.1
$region0: #{tpu_custom_call.1}
  #allocation0 [shape = 'u32[]', space=smem, size = 0x4, offset = 0x4, fixed_abs, tag = 'smem constant byte address 0x4 - core index']
  #allocation1 [shape = 'u32[72,128]{1,0:T(1,128)}', space=vmem, size = 0x9000, scoped, tag = 'internal scratch']
  %s0 = inlined_call_operand.hbm [shape: f32[512,256], index: 0, kind: input, shape index: {}]
  %s1 = inlined_call_operand.hbm [shape: bf16[256,128], index: 1, kind: input, shape index: {}]
  %s2 = inlined_call_operand.vmem [shape: f32[1,128], index: 2, kind: input, shape index: {}]
  %s3 = inlined_call_operand.hbm [shape: bf16[128,128], index: 3, kind: input, shape index: {}]
  %s4 = inlined_call_operand.hbm [shape: f32[1,128], index: 4, kind: input, shape index: {}]
  %s5 = inlined_call_operand.hbm [shape: bf16[128,128], index: 5, kind: input, shape index: {}]
  %s6 = inlined_call_operand.vmem [shape: f32[1,128], index: 6, kind: input, shape index: {}]
  %s7 = inlined_call_operand.hbm [shape: bf16[128,256], index: 7, kind: input, shape index: {}]
  %s8 = inlined_call_operand.vmem [shape: f32[1,256], index: 8, kind: input, shape index: {}]
  %s9 = inlined_call_operand.hbm [shape: f32[512,256], index: 9, kind: output, shape index: {}]
  %s10 = sld [smem:[#allocation0]]
  $region93: #{tpu_custom_call.1} parent=0
    _
  %s12 = ssub.s32 1, %s10
  %s13 = scalar_select 0, %s12, %s10
  $region1: #{tpu_custom_call.1} parent=0
    #allocation2 [shape = 'u8[524288]{0}', space=vmem, size = 0x80000, scoped, tag = 'input window, operand 0']
    #allocation3 [shape = 's32[2]{0}', space=sflag, size = 0x8, scoped, tag = 'scoped memory for tpu_custom_call.1']
    #allocation4 [shape = 's32[2]{0}', space=sflag, size = 0x8, scoped, tag = 'scoped memory for tpu_custom_call.1']
    #allocation5 [shape = 'u8[65536]{0}', space=vmem, size = 0x10000, scoped, tag = 'input window, operand 1, single buffered']
    #allocation6 [shape = 's32[1]{0}', space=sflag, size = 0x4, scoped, tag = 'scoped memory for tpu_custom_call.1']
    #allocation7 [shape = 'u8[32768]{0}', space=vmem, size = 0x8000, scoped, tag = 'input window, operand 3, single buffered']
    #allocation8 [shape = 'u8[512]{0}', space=vmem, size = 0x400, scoped, tag = 'input window, operand 4, single buffered']
    #allocation9 [shape = 's32[1]{0}', space=sflag, size = 0x4, scoped, tag = 'scoped memory for tpu_custom_call.1']
    #allocation10 [shape = 'u8[32768]{0}', space=vmem, size = 0x8000, scoped, tag = 'input window, operand 5, single buffered']
    #allocation11 [shape = 'u8[65536]{0}', space=vmem, size = 0x10000, scoped, tag = 'input window, operand 7, single buffered']
    #allocation12 [shape = 's32[1]{0}', space=sflag, size = 0x4, scoped, tag = 'scoped memory for tpu_custom_call.1']
    #allocation13 [shape = 'u8[524288]{0}', space=vmem, size = 0x80000, scoped, tag = 'output window, operand 0']
    %14 = vsyncpa [#allocation3], 0
    %s15 = scalar_lea.sflag [#allocation3], 1
    %16 = vsyncpa %s15, 0
    %17 = vsyncpa [#allocation6], 0
    %18 = vsyncpa [#allocation9], 0
    %19 = vsyncpa [#allocation12], 0
    %20 = vsyncpa [#allocation4], 0
    %s21 = scalar_lea.sflag [#allocation4], 1
    %22 = vsyncpa %s21, 0
    loop: start=0, step=1, limit=4
    $region2: #{tpu_custom_call.1} parent=1 // loop_pre_header
      _
    $region3: #{tpu_custom_call.1} parent=1 // loop_header
      %s24 = sphi 0, %s28
      %p25 = scmp.ge.s32.totalorder %s24, 4
      %s34 = sphi 0, %s36
      %s37 = sphi 0, %s34
      %s38 = sphi 0, %s37
      %s54 = sphi 0, %s38
      %s58 = sphi 0, %s58
      %s60 = sphi 0, %s58
      %s61 = sphi 0, %s60
      %s75 = sphi 0, %s61
      %s79 = sphi 0, %s79
      %s81 = sphi 0, %s79
      %s82 = sphi 0, %s81
      %s96 = sphi 0, %s82
      %s100 = sphi 0, %s100
      %s102 = sphi 0, %s100
      %s103 = sphi 0, %s102
      %s117 = sphi 0, %s103
      %s121 = sphi 0, %s121
      %s123 = sphi 0, %s121
      %s124 = sphi 0, %s123
      %s138 = sphi 0, %s124
      %s142 = sphi 0, %s142
      %s144 = sphi 0, %s142
      %s145 = sphi 0, %s144
      %s159 = sphi 0, %s145
      %s163 = sphi 0, %s163
      %s165 = sphi 0, %s163
      %s166 = sphi 0, %s165
      %s180 = sphi 0, %s166
      %s184 = sphi 0, %s184
      %s186 = sphi 0, %s184
      %s187 = sphi 0, %s186
      %s201 = sphi 0, %s187
      %s205 = sphi 0, %s205
      %s207 = sphi 0, %s205
      %s208 = sphi 0, %s207
      %s222 = sphi 0, %s208
      %s228 = sphi 0, %s230
      %s231 = sphi 0, %s228
      %s232 = sphi 0, %s231
      %s248 = sphi 0, %s232
    $region4: #{tpu_custom_call.1} parent=1 // loop_header_branch
      %27 = sbr.rel (%p25) target = $region8
    $region5: #{tpu_custom_call.1} parent=1 // loop_body
      %s29 = ssub.s32 %s24, 1
      %s30 = ssub.s32 %s24, 2
      %s31 = sadd.s32 %s24, 1
      %s32 = ssub.s32 %s24, %s31
      %p33 = scmp.eq.s32.totalorder %s32, 0
      %s35 = sadd.s32 %s34, 1
      %s36 = scalar_select %p33, %s34, %s35
      %p39 = pneg %p33
      %p40 = scmp.eq.s32.totalorder %s24, 1
      %p41 = por %p39, %p40
      %p42 = scmp.ne.s32.totalorder %s34, %s37
      %p43 = scmp.eq.s32.totalorder %s24, 0
      %p44 = por %p42, %p43
      %p45 = scmp.ne.s32.totalorder %s34, %s37
      %p46 = scmp.eq.s32.totalorder %s29, 1
      %p47 = por %p45, %p46
      %p48 = scmp.ne.s32.totalorder %s37, %s38
      %p49 = scmp.eq.s32.totalorder %s29, 0
      %p50 = por %p48, %p49
      %p51 = scmp.ne.s32.totalorder %s37, %s38
      %p52 = scmp.eq.s32.totalorder %s30, 1
      %p53 = por %p51, %p52
      %p55 = scmp.ne.s32.totalorder %s38, %s54
      %p56 = scmp.eq.s32.totalorder %s30, 0
      %p57 = por %p55, %p56
      %s59 = sadd.s32 %s58, 1
      %p62 = scmp.eq.s32.totalorder %s24, 1
      %p63 = scmp.ne.s32.totalorder %s58, %s60
      %p64 = scmp.eq.s32.totalorder %s24, 0
      %p65 = por %p63, %p64
      %p66 = scmp.ne.s32.totalorder %s58, %s60
      %p67 = scmp.eq.s32.totalorder %s29, 1
      %p68 = por %p66, %p67
      %p69 = scmp.ne.s32.totalorder %s60, %s61
      %p70 = scmp.eq.s32.totalorder %s29, 0
      %p71 = por %p69, %p70
      %p72 = scmp.ne.s32.totalorder %s60, %s61
      %p73 = scmp.eq.s32.totalorder %s30, 1
      %p74 = por %p72, %p73
      %p76 = scmp.ne.s32.totalorder %s61, %s75
      %p77 = scmp.eq.s32.totalorder %s30, 0
      %p78 = por %p76, %p77
      %s80 = sadd.s32 %s79, 1
      %p83 = scmp.eq.s32.totalorder %s24, 1
      %p84 = scmp.ne.s32.totalorder %s79, %s81
      %p85 = scmp.eq.s32.totalorder %s24, 0
      %p86 = por %p84, %p85
      %p87 = scmp.ne.s32.totalorder %s79, %s81
      %p88 = scmp.eq.s32.totalorder %s29, 1
      %p89 = por %p87, %p88
      %p90 = scmp.ne.s32.totalorder %s81, %s82
      %p91 = scmp.eq.s32.totalorder %s29, 0
      %p92 = por %p90, %p91
      %p93 = scmp.ne.s32.totalorder %s81, %s82
      %p94 = scmp.eq.s32.totalorder %s30, 1
      %p95 = por %p93, %p94
      %p97 = scmp.ne.s32.totalorder %s82, %s96
      %p98 = scmp.eq.s32.totalorder %s30, 0
      %p99 = por %p97, %p98
      %s101 = sadd.s32 %s100, 1
      %p104 = scmp.eq.s32.totalorder %s24, 1
      %p105 = scmp.ne.s32.totalorder %s100, %s102
      %p106 = scmp.eq.s32.totalorder %s24, 0
      %p107 = por %p105, %p106
      %p108 = scmp.ne.s32.totalorder %s100, %s102
      %p109 = scmp.eq.s32.totalorder %s29, 1
      %p110 = por %p108, %p109
      %p111 = scmp.ne.s32.totalorder %s102, %s103
      %p112 = scmp.eq.s32.totalorder %s29, 0
      %p113 = por %p111, %p112
      %p114 = scmp.ne.s32.totalorder %s102, %s103
      %p115 = scmp.eq.s32.totalorder %s30, 1
      %p116 = por %p114, %p115
      %p118 = scmp.ne.s32.totalorder %s103, %s117
      %p119 = scmp.eq.s32.totalorder %s30, 0
      %p120 = por %p118, %p119
      %s122 = sadd.s32 %s121, 1
      %p125 = scmp.eq.s32.totalorder %s24, 1
      %p126 = scmp.ne.s32.totalorder %s121, %s123
      %p127 = scmp.eq.s32.totalorder %s24, 0
      %p128 = por %p126, %p127
      %p129 = scmp.ne.s32.totalorder %s121, %s123
      %p130 = scmp.eq.s32.totalorder %s29, 1
      %p131 = por %p129, %p130
      %p132 = scmp.ne.s32.totalorder %s123, %s124
      %p133 = scmp.eq.s32.totalorder %s29, 0
      %p134 = por %p132, %p133
      %p135 = scmp.ne.s32.totalorder %s123, %s124
      %p136 = scmp.eq.s32.totalorder %s30, 1
      %p137 = por %p135, %p136
      %p139 = scmp.ne.s32.totalorder %s124, %s138
      %p140 = scmp.eq.s32.totalorder %s30, 0
      %p141 = por %p139, %p140
      %s143 = sadd.s32 %s142, 1
      %p146 = scmp.eq.s32.totalorder %s24, 1
      %p147 = scmp.ne.s32.totalorder %s142, %s144
      %p148 = scmp.eq.s32.totalorder %s24, 0
      %p149 = por %p147, %p148
      %p150 = scmp.ne.s32.totalorder %s142, %s144
      %p151 = scmp.eq.s32.totalorder %s29, 1
      %p152 = por %p150, %p151
      %p153 = scmp.ne.s32.totalorder %s144, %s145
      %p154 = scmp.eq.s32.totalorder %s29, 0
      %p155 = por %p153, %p154
      %p156 = scmp.ne.s32.totalorder %s144, %s145
      %p157 = scmp.eq.s32.totalorder %s30, 1
      %p158 = por %p156, %p157
      %p160 = scmp.ne.s32.totalorder %s145, %s159
      %p161 = scmp.eq.s32.totalorder %s30, 0
      %p162 = por %p160, %p161
      %s164 = sadd.s32 %s163, 1
      %p167 = scmp.eq.s32.totalorder %s24, 1
      %p168 = scmp.ne.s32.totalorder %s163, %s165
      %p169 = scmp.eq.s32.totalorder %s24, 0
      %p170 = por %p168, %p169
      %p171 = scmp.ne.s32.totalorder %s163, %s165
      %p172 = scmp.eq.s32.totalorder %s29, 1
      %p173 = por %p171, %p172
      %p174 = scmp.ne.s32.totalorder %s165, %s166
      %p175 = scmp.eq.s32.totalorder %s29, 0
      %p176 = por %p174, %p175
      %p177 = scmp.ne.s32.totalorder %s165, %s166
      %p178 = scmp.eq.s32.totalorder %s30, 1
      %p179 = por %p177, %p178
      %p181 = scmp.ne.s32.totalorder %s166, %s180
      %p182 = scmp.eq.s32.totalorder %s30, 0
      %p183 = por %p181, %p182
      %s185 = sadd.s32 %s184, 1
      %p188 = scmp.eq.s32.totalorder %s24, 1
      %p189 = scmp.ne.s32.totalorder %s184, %s186
      %p190 = scmp.eq.s32.totalorder %s24, 0
      %p191 = por %p189, %p190
      %p192 = scmp.ne.s32.totalorder %s184, %s186
      %p193 = scmp.eq.s32.totalorder %s29, 1
      %p194 = por %p192, %p193
      %p195 = scmp.ne.s32.totalorder %s186, %s187
      %p196 = scmp.eq.s32.totalorder %s29, 0
      %p197 = por %p195, %p196
      %p198 = scmp.ne.s32.totalorder %s186, %s187
      %p199 = scmp.eq.s32.totalorder %s30, 1
      %p200 = por %p198, %p199
      %p202 = scmp.ne.s32.totalorder %s187, %s201
      %p203 = scmp.eq.s32.totalorder %s30, 0
      %p204 = por %p202, %p203
      %s206 = sadd.s32 %s205, 1
      %p209 = scmp.eq.s32.totalorder %s24, 1
      %p210 = scmp.ne.s32.totalorder %s205, %s207
      %p211 = scmp.eq.s32.totalorder %s24, 0
      %p212 = por %p210, %p211
      %p213 = scmp.ne.s32.totalorder %s205, %s207
      %p214 = scmp.eq.s32.totalorder %s29, 1
      %p215 = por %p213, %p214
      %p216 = scmp.ne.s32.totalorder %s207, %s208
      %p217 = scmp.eq.s32.totalorder %s29, 0
      %p218 = por %p216, %p217
      %p219 = scmp.ne.s32.totalorder %s207, %s208
      %p220 = scmp.eq.s32.totalorder %s30, 1
      %p221 = por %p219, %p220
      %p223 = scmp.ne.s32.totalorder %s208, %s222
      %p224 = scmp.eq.s32.totalorder %s30, 0
      %p225 = por %p223, %p224
      %s226 = ssub.s32 %s24, %s31
      %p227 = scmp.eq.s32.totalorder %s226, 0
      %s229 = sadd.s32 %s228, 1
      %s230 = scalar_select %p227, %s228, %s229
      %p233 = pneg %p227
      %p234 = scmp.eq.s32.totalorder %s24, 1
      %p235 = por %p233, %p234
      %p236 = scmp.ne.s32.totalorder %s228, %s231
      %p237 = scmp.eq.s32.totalorder %s24, 0
      %p238 = por %p236, %p237
      %p239 = scmp.ne.s32.totalorder %s228, %s231
      %p240 = scmp.eq.s32.totalorder %s29, 1
      %p241 = por %p239, %p240
      %p242 = scmp.ne.s32.totalorder %s231, %s232
      %p243 = scmp.eq.s32.totalorder %s29, 0
      %p244 = por %p242, %p243
      %p245 = scmp.ne.s32.totalorder %s231, %s232
      %p246 = scmp.eq.s32.totalorder %s30, 1
      %p247 = por %p245, %p246
      %p249 = scmp.ne.s32.totalorder %s232, %s248
      %p250 = scmp.eq.s32.totalorder %s30, 0
      %p251 = por %p249, %p250
      %p252 = scmp.le.s32.totalorder 1, %s24
      %p253 = scmp.lt.s32.totalorder %s24, 3
      %p254 = pnand %p252, %p253
      %p255 = pneg %p254
      // Predicated region
      $region9: #{tpu_custom_call.1} parent=5 // pred_check
        _
      $region10: #{tpu_custom_call.1} parent=5 // pred_check_branch
        %257 = sbr.rel (%p254) target = $region12
      $region11: #{tpu_custom_call.1} parent=5 // pred_region
        %s258 = ssub.s32 %s24, 1
        // Predicated region
        $region13: #{tpu_custom_call.1} parent=11 // pred_check
          %p259 = pneg %p71
        $region14: #{tpu_custom_call.1} parent=11 // pred_check_branch
          %261 = sbr.rel (%p259) target = $region16
        $region15: #{tpu_custom_call.1} parent=11 // pred_region
          %263 = vsyncadd [#allocation6], 0
          %s264 = sshll.u32 %s1, 4
          %s265 = int_to_ptr.hbm [resolvable:$true] %s264
          %s266 = sshll.u32 [#allocation5], 4
          %s267 = int_to_ptr.vmem [resolvable:$true] %s266
          %272 = dma.hbm_to_vmem [thread:$0]  %s265, 2048, %s267, [#allocation6], 64, 64, 4
        $region16: #{tpu_custom_call.1} parent=11 // pred_fallthru
          _
        // Predicated region
        $region17: #{tpu_custom_call.1} parent=11 // pred_check
          %p273 = pneg %p92
        $region18: #{tpu_custom_call.1} parent=11 // pred_check_branch
          %275 = sbr.rel (%p273) target = $region20
        $region19: #{tpu_custom_call.1} parent=11 // pred_region
          _
        $region20: #{tpu_custom_call.1} parent=11 // pred_fallthru
          _
        // Predicated region
        $region21: #{tpu_custom_call.1} parent=11 // pred_check
          %p276 = pneg %p113
        $region22: #{tpu_custom_call.1} parent=11 // pred_check_branch
          %278 = sbr.rel (%p276) target = $region24
        $region23: #{tpu_custom_call.1} parent=11 // pred_region
          %280 = vsyncadd [#allocation6], 0
          %s281 = sshll.u32 %s3, 4
          %s282 = int_to_ptr.hbm [resolvable:$true] %s281
          %s283 = sshll.u32 [#allocation7], 4
          %s284 = int_to_ptr.vmem [resolvable:$true] %s283
          %289 = dma.hbm_to_vmem [thread:$0]  %s282, 1024, %s284, [#allocation6], 64, 64, 4
        $region24: #{tpu_custom_call.1} parent=11 // pred_fallthru
          _
        // Predicated region
        $region25: #{tpu_custom_call.1} parent=11 // pred_check
          %p290 = pneg %p134
        $region26: #{tpu_custom_call.1} parent=11 // pred_check_branch
          %292 = sbr.rel (%p290) target = $region28
        $region27: #{tpu_custom_call.1} parent=11 // pred_region
          %294 = vsyncadd [#allocation9], 0
          %s296 = sshll.u32 %s4, 4
          %s297 = int_to_ptr.hbm [resolvable:$true] %s296
          %s298 = sshll.u32 [#allocation8], 4
          %s299 = int_to_ptr.vmem [resolvable:$true] %s298
          %301 = dma.hbm_to_vmem [thread:$0]  %s297, 16, %s299, [#allocation9]
        $region28: #{tpu_custom_call.1} parent=11 // pred_fallthru
          _
        // Predicated region
        $region29: #{tpu_custom_call.1} parent=11 // pred_check
          %p302 = pneg %p155
        $region30: #{tpu_custom_call.1} parent=11 // pred_check_branch
          %304 = sbr.rel (%p302) target = $region32
        $region31: #{tpu_custom_call.1} parent=11 // pred_region
          %306 = vsyncadd [#allocation9], 0
          %s307 = sshll.u32 %s5, 4
          %s308 = int_to_ptr.hbm [resolvable:$true] %s307
          %s309 = sshll.u32 [#allocation10], 4
          %s310 = int_to_ptr.vmem [resolvable:$true] %s309
          %315 = dma.hbm_to_vmem [thread:$0]  %s308, 1024, %s310, [#allocation9], 64, 64, 4
        $region32: #{tpu_custom_call.1} parent=11 // pred_fallthru
          _
        // Predicated region
        $region33: #{tpu_custom_call.1} parent=11 // pred_check
          %p316 = pneg %p176
        $region34: #{tpu_custom_call.1} parent=11 // pred_check_branch
          %318 = sbr.rel (%p316) target = $region36
        $region35: #{tpu_custom_call.1} parent=11 // pred_region
          _
        $region36: #{tpu_custom_call.1} parent=11 // pred_fallthru
          _
        // Predicated region
        $region37: #{tpu_custom_call.1} parent=11 // pred_check
          %p319 = pneg %p197
        $region38: #{tpu_custom_call.1} parent=11 // pred_check_branch
          %321 = sbr.rel (%p319) target = $region40
        $region39: #{tpu_custom_call.1} parent=11 // pred_region
          %323 = vsyncadd [#allocation12], 0
          %s324 = sshll.u32 %s7, 4
          %s325 = int_to_ptr.hbm [resolvable:$true] %s324
          %s326 = sshll.u32 [#allocation11], 4
          %s327 = int_to_ptr.vmem [resolvable:$true] %s326
          %332 = dma.hbm_to_vmem [thread:$0]  %s325, 2048, %s327, [#allocation12], 128, 128, 8
        $region40: #{tpu_custom_call.1} parent=11 // pred_fallthru
          _
        // Predicated region
        $region41: #{tpu_custom_call.1} parent=11 // pred_check
          %p333 = pneg %p218
        $region42: #{tpu_custom_call.1} parent=11 // pred_check_branch
          %335 = sbr.rel (%p333) target = $region44
        $region43: #{tpu_custom_call.1} parent=11 // pred_region
          _
        $region44: #{tpu_custom_call.1} parent=11 // pred_fallthru
          _
      $region12: #{tpu_custom_call.1} parent=5 // pred_fallthru
        _
      %p336 = scmp.lt.s32.totalorder %s24, 2
      // Predicated region
      $region45: #{tpu_custom_call.1} parent=5 // pred_check
        %p337 = pneg %p336
      $region46: #{tpu_custom_call.1} parent=5 // pred_check_branch
        %339 = sbr.rel (%p337) target = $region48
      $region47: #{tpu_custom_call.1} parent=5 // pred_region
        // Predicated region
        $region49: #{tpu_custom_call.1} parent=47 // pred_check
          %p340 = pneg %p44
        $region50: #{tpu_custom_call.1} parent=47 // pred_check_branch
          %342 = sbr.rel (%p340) target = $region52
        $region51: #{tpu_custom_call.1} parent=47 // pred_region
          %s343 = sand.u32 %s34, 1
          %s344 = scalar_lea.sflag [#allocation3], %s343
          %s345 = sand.u32 %s34, 1
          %s346 = smul.addr %s345, 512
          %s347 = scalar_lea.vmem [#allocation2], %s346
          %s348 = smul.u32 32, %s24
          %350 = vsyncadd %s344, 0
          %s351 = smul.addr %s348, 2
          %s352 = smul.addr %s351, 8
          %s353 = scalar_lea.hbm %s0, %s352
          %s354 = sshll.u32 %s353, 4
          %s355 = int_to_ptr.hbm [resolvable:$true] %s354
          %s356 = sshll.u32 %s347, 4
          %s357 = int_to_ptr.vmem [resolvable:$true] %s356
          %362 = dma.hbm_to_vmem [thread:$0]  %s355, 8192, %s357, %s344, 256, 256, 16
        $region52: #{tpu_custom_call.1} parent=47 // pred_fallthru
          _
      $region48: #{tpu_custom_call.1} parent=5 // pred_fallthru
        _
      %p363 = scmp.le.s32.totalorder 1, %s24
      %p364 = scmp.lt.s32.totalorder %s24, 3
      %p365 = pnand %p363, %p364
      %p366 = pneg %p365
      // Predicated region
      $region53: #{tpu_custom_call.1} parent=5 // pred_check
        _
      $region54: #{tpu_custom_call.1} parent=5 // pred_check_branch
        %368 = sbr.rel (%p365) target = $region56
      $region55: #{tpu_custom_call.1} parent=5 // pred_region
        %s369 = ssub.s32 %s24, 1
        %s370 = sand.u32 %s37, 1
        %s371 = scalar_lea.sflag [#allocation3], %s370
        %s372 = sand.u32 %s37, 1
        %s373 = smul.addr %s372, 512
        %s374 = scalar_lea.vmem [#allocation2], %s373
        // Predicated region
        $region57: #{tpu_custom_call.1} parent=55 // pred_check
          %p375 = pneg %p50
        $region58: #{tpu_custom_call.1} parent=55 // pred_check_branch
          %377 = sbr.rel (%p375) target = $region60
        $region59: #{tpu_custom_call.1} parent=55 // pred_region
          %379 = dma.done %s371, 8192
        $region60: #{tpu_custom_call.1} parent=55 // pred_fallthru
          _
        // Predicated region
        $region61: #{tpu_custom_call.1} parent=55 // pred_check
          %p380 = pneg %p71
        $region62: #{tpu_custom_call.1} parent=55 // pred_check_branch
          %382 = sbr.rel (%p380) target = $region64
        $region63: #{tpu_custom_call.1} parent=55 // pred_region
          %384 = dma.done [#allocation6], 2048
        $region64: #{tpu_custom_call.1} parent=55 // pred_fallthru
          _
        // Predicated region
        $region65: #{tpu_custom_call.1} parent=55 // pred_check
          %p385 = pneg %p113
        $region66: #{tpu_custom_call.1} parent=55 // pred_check_branch
          %387 = sbr.rel (%p385) target = $region68
        $region67: #{tpu_custom_call.1} parent=55 // pred_region
          %389 = dma.done [#allocation6], 1024
        $region68: #{tpu_custom_call.1} parent=55 // pred_fallthru
          _
        // Predicated region
        $region69: #{tpu_custom_call.1} parent=55 // pred_check
          %p390 = pneg %p134
        $region70: #{tpu_custom_call.1} parent=55 // pred_check_branch
          %392 = sbr.rel (%p390) target = $region72
        $region71: #{tpu_custom_call.1} parent=55 // pred_region
          %394 = dma.done [#allocation9], 16
        $region72: #{tpu_custom_call.1} parent=55 // pred_fallthru
          _
        // Predicated region
        $region73: #{tpu_custom_call.1} parent=55 // pred_check
          %p395 = pneg %p155
        $region74: #{tpu_custom_call.1} parent=55 // pred_check_branch
          %397 = sbr.rel (%p395) target = $region76
        $region75: #{tpu_custom_call.1} parent=55 // pred_region
          %399 = dma.done [#allocation9], 1024
        $region76: #{tpu_custom_call.1} parent=55 // pred_fallthru
          _
        // Predicated region
        $region77: #{tpu_custom_call.1} parent=55 // pred_check
          %p400 = pneg %p197
        $region78: #{tpu_custom_call.1} parent=55 // pred_check_branch
          %402 = sbr.rel (%p400) target = $region80
        $region79: #{tpu_custom_call.1} parent=55 // pred_region
          %404 = dma.done [#allocation12], 2048
        $region80: #{tpu_custom_call.1} parent=55 // pred_fallthru
          _
        %s405 = sand.u32 %s37, 1
        %s406 = scalar_lea.sflag [#allocation3], %s405
        %s407 = sand.u32 %s37, 1
        %s408 = smul.addr %s407, 512
        %s409 = scalar_lea.vmem [#allocation2], %s408
        %p410 = pneg %p50
        %p411 = pneg %p47
        %p412 = pneg %p71
        %p413 = pneg %p68
        %p414 = pneg %p92
        %p415 = pneg %p89
        %p416 = pneg %p113
        %p417 = pneg %p110
        %p418 = pneg %p134
        %p419 = pneg %p131
        %p420 = pneg %p155
        %p421 = pneg %p152
        %p422 = pneg %p176
        %p423 = pneg %p173
        %p424 = pneg %p197
        %p425 = pneg %p194
        %p426 = pneg %p218
        %p427 = pneg %p215
        %p428 = pneg %p244
        %p429 = pneg %p241
        %s430 = sand.u32 %s231, 1
        %s431 = scalar_lea.sflag [#allocation4], %s430
        %s432 = sand.u32 %s231, 1
        %s433 = smul.addr %s432, 512
        %s434 = scalar_lea.vmem [#allocation13], %s433
        %s435 = smul.u32 32, %s29
        %s436 = smul.u32 32, %s29
        %v437 = vld [vmem:[%s374] sm:$0xff]
        %v438 = vld [vmem:[%s374 + $0x8] sm:$0xff]
        %v439 = vld [vmem:[%s374 + $0x10] sm:$0xff]
        %v440 = vld [vmem:[%s374 + $0x18] sm:$0xff]
        %v441 = vld [vmem:[%s374 + $0x20] sm:$0xff]
        %v442 = vld [vmem:[%s374 + $0x28] sm:$0xff]
        %v443 = vld [vmem:[%s374 + $0x30] sm:$0xff]
        %v444 = vld [vmem:[%s374 + $0x38] sm:$0xff]
        %v445 = vld [vmem:[%s374 + $0x40] sm:$0xff]
        %v446 = vld [vmem:[%s374 + $0x48] sm:$0xff]
        %v447 = vld [vmem:[%s374 + $0x50] sm:$0xff]
        %v448 = vld [vmem:[%s374 + $0x58] sm:$0xff]
        %v449 = vld [vmem:[%s374 + $0x60] sm:$0xff]
        %v450 = vld [vmem:[%s374 + $0x68] sm:$0xff]
        %v451 = vld [vmem:[%s374 + $0x70] sm:$0xff]
        %v452 = vld [vmem:[%s374 + $0x78] sm:$0xff]
        %v453 = vld [vmem:[%s374 + $0x80] sm:$0xff]
        %v454 = vld [vmem:[%s374 + $0x88] sm:$0xff]
        %v455 = vld [vmem:[%s374 + $0x90] sm:$0xff]
        %v456 = vld [vmem:[%s374 + $0x98] sm:$0xff]
        %v457 = vld [vmem:[%s374 + $0xa0] sm:$0xff]
        %v458 = vld [vmem:[%s374 + $0xa8] sm:$0xff]
        %v459 = vld [vmem:[%s374 + $0xb0] sm:$0xff]
        %v460 = vld [vmem:[%s374 + $0xb8] sm:$0xff]
        %v461 = vld [vmem:[%s374 + $0xc0] sm:$0xff]
        %v462 = vld [vmem:[%s374 + $0xc8] sm:$0xff]
        %v463 = vld [vmem:[%s374 + $0xd0] sm:$0xff]
        %v464 = vld [vmem:[%s374 + $0xd8] sm:$0xff]
        %v465 = vld [vmem:[%s374 + $0xe0] sm:$0xff]
        %v466 = vld [vmem:[%s374 + $0xe8] sm:$0xff]
        %v467 = vld [vmem:[%s374 + $0xf0] sm:$0xff]
        %v468 = vld [vmem:[%s374 + $0xf8] sm:$0xff]
        %v469 = vld [vmem:[%s374 + $0x100] sm:$0xff]
        %v470 = vld [vmem:[%s374 + $0x108] sm:$0xff]
        %v471 = vld [vmem:[%s374 + $0x110] sm:$0xff]
        %v472 = vld [vmem:[%s374 + $0x118] sm:$0xff]
        %v473 = vld [vmem:[%s374 + $0x120] sm:$0xff]
        %v474 = vld [vmem:[%s374 + $0x128] sm:$0xff]
        %v475 = vld [vmem:[%s374 + $0x130] sm:$0xff]
        %v476 = vld [vmem:[%s374 + $0x138] sm:$0xff]
        %v477 = vld [vmem:[%s374 + $0x140] sm:$0xff]
        %v478 = vld [vmem:[%s374 + $0x148] sm:$0xff]
        %v479 = vld [vmem:[%s374 + $0x150] sm:$0xff]
        %v480 = vld [vmem:[%s374 + $0x158] sm:$0xff]
        %v481 = vld [vmem:[%s374 + $0x160] sm:$0xff]
        %v482 = vld [vmem:[%s374 + $0x168] sm:$0xff]
        %v483 = vld [vmem:[%s374 + $0x170] sm:$0xff]
        %v484 = vld [vmem:[%s374 + $0x178] sm:$0xff]
        %v485 = vld [vmem:[%s374 + $0x180] sm:$0xff]
        %v486 = vld [vmem:[%s374 + $0x188] sm:$0xff]
        %v487 = vld [vmem:[%s374 + $0x190] sm:$0xff]
        %v488 = vld [vmem:[%s374 + $0x198] sm:$0xff]
        %v489 = vld [vmem:[%s374 + $0x1a0] sm:$0xff]
        %v490 = vld [vmem:[%s374 + $0x1a8] sm:$0xff]
        %v491 = vld [vmem:[%s374 + $0x1b0] sm:$0xff]
        %v492 = vld [vmem:[%s374 + $0x1b8] sm:$0xff]
        %v493 = vld [vmem:[%s374 + $0x1c0] sm:$0xff]
        %v494 = vld [vmem:[%s374 + $0x1c8] sm:$0xff]
        %v495 = vld [vmem:[%s374 + $0x1d0] sm:$0xff]
        %v496 = vld [vmem:[%s374 + $0x1d8] sm:$0xff]
        %v497 = vld [vmem:[%s374 + $0x1e0] sm:$0xff]
        %v498 = vld [vmem:[%s374 + $0x1e8] sm:$0xff]
        %v499 = vld [vmem:[%s374 + $0x1f0] sm:$0xff]
        %v500 = vld [vmem:[%s374 + $0x1f8] sm:$0xff]
        %v501 = vpack.c.bf16 %v439, %v437
        %v502 = vpack.c.bf16 %v440, %v438
        %v503 = vpack.c.bf16 %v443, %v441
        %v504 = vpack.c.bf16 %v444, %v442
        %v505 = vpack.c.bf16 %v447, %v445
        %v506 = vpack.c.bf16 %v448, %v446
        %v507 = vpack.c.bf16 %v451, %v449
        %v508 = vpack.c.bf16 %v452, %v450
        %v509 = vpack.c.bf16 %v455, %v453
        %v510 = vpack.c.bf16 %v456, %v454
        %v511 = vpack.c.bf16 %v459, %v457
        %v512 = vpack.c.bf16 %v460, %v458
        %v513 = vpack.c.bf16 %v463, %v461
        %v514 = vpack.c.bf16 %v464, %v462
        %v515 = vpack.c.bf16 %v467, %v465
        %v516 = vpack.c.bf16 %v468, %v466
        %v517 = vpack.c.bf16 %v471, %v469
        %v518 = vpack.c.bf16 %v472, %v470
        %v519 = vpack.c.bf16 %v475, %v473
        %v520 = vpack.c.bf16 %v476, %v474
        %v521 = vpack.c.bf16 %v479, %v477
        %v522 = vpack.c.bf16 %v480, %v478
        %v523 = vpack.c.bf16 %v483, %v481
        %v524 = vpack.c.bf16 %v484, %v482
        %v525 = vpack.c.bf16 %v487, %v485
        %v526 = vpack.c.bf16 %v488, %v486
        %v527 = vpack.c.bf16 %v491, %v489
        %v528 = vpack.c.bf16 %v492, %v490
        %v529 = vpack.c.bf16 %v495, %v493
        %v530 = vpack.c.bf16 %v496, %v494
        %v531 = vpack.c.bf16 %v499, %v497
        %v532 = vpack.c.bf16 %v500, %v498
        %v533 = vld [vmem:[#allocation5] sm:$0xf]
        %v534 = vld [vmem:[#allocation5 + $0x4] sm:$0xf]
        %v535 = vld [vmem:[#allocation5 + $0x8] sm:$0xf]
        %v536 = vld [vmem:[#allocation5 + $0xc] sm:$0xf]
        %v537 = vld [vmem:[#allocation5 + $0x10] sm:$0xf]
        %v538 = vld [vmem:[#allocation5 + $0x14] sm:$0xf]
        %v539 = vld [vmem:[#allocation5 + $0x18] sm:$0xf]
        %v540 = vld [vmem:[#allocation5 + $0x1c] sm:$0xf]
        %v541 = vld [vmem:[#allocation5 + $0x20] sm:$0xf]
        %v542 = vld [vmem:[#allocation5 + $0x24] sm:$0xf]
        %v543 = vld [vmem:[#allocation5 + $0x28] sm:$0xf]
        %v544 = vld [vmem:[#allocation5 + $0x2c] sm:$0xf]
        %v545 = vld [vmem:[#allocation5 + $0x30] sm:$0xf]
        %v546 = vld [vmem:[#allocation5 + $0x34] sm:$0xf]
        %v547 = vld [vmem:[#allocation5 + $0x38] sm:$0xf]
        %v548 = vld [vmem:[#allocation5 + $0x3c] sm:$0xf]
        %v549 = vld [vmem:[#allocation5 + $0x40] sm:$0xf]
        %v550 = vld [vmem:[#allocation5 + $0x44] sm:$0xf]
        %v551 = vld [vmem:[#allocation5 + $0x48] sm:$0xf]
        %v552 = vld [vmem:[#allocation5 + $0x4c] sm:$0xf]
        %v553 = vld [vmem:[#allocation5 + $0x50] sm:$0xf]
        %v554 = vld [vmem:[#allocation5 + $0x54] sm:$0xf]
        %v555 = vld [vmem:[#allocation5 + $0x58] sm:$0xf]
        %v556 = vld [vmem:[#allocation5 + $0x5c] sm:$0xf]
        %v557 = vld [vmem:[#allocation5 + $0x60] sm:$0xf]
        %v558 = vld [vmem:[#allocation5 + $0x64] sm:$0xf]
        %v559 = vld [vmem:[#allocation5 + $0x68] sm:$0xf]
        %v560 = vld [vmem:[#allocation5 + $0x6c] sm:$0xf]
        %v561 = vld [vmem:[#allocation5 + $0x70] sm:$0xf]
        %v562 = vld [vmem:[#allocation5 + $0x74] sm:$0xf]
        %v563 = vld [vmem:[#allocation5 + $0x78] sm:$0xf]
        %v564 = vld [vmem:[#allocation5 + $0x7c] sm:$0xf]
        %v565 = vld [vmem:[%s2] sm:$0x1]
        %v567 = vperm.slane %v565, 0
        %v601 = vunpack.c.l.b16 %v533
        %v602 = vunpack.c.l.b16 %v534
        %v603 = vunpack.c.l.b16 %v535
        %v604 = vunpack.c.l.b16 %v536
        %v605 = vunpack.c.l.b16 %v537
        %v606 = vunpack.c.l.b16 %v538
        %v607 = vunpack.c.l.b16 %v539
        %v608 = vunpack.c.l.b16 %v540
        %v609 = vunpack.c.l.b16 %v541
        %v610 = vunpack.c.l.b16 %v542
        %v611 = vunpack.c.l.b16 %v543
        %v612 = vunpack.c.l.b16 %v544
        %v613 = vunpack.c.l.b16 %v545
        %v614 = vunpack.c.l.b16 %v546
        %v615 = vunpack.c.l.b16 %v547
        %v616 = vunpack.c.l.b16 %v548
        %v617 = vunpack.c.l.b16 %v549
        %v618 = vunpack.c.l.b16 %v550
        %v619 = vunpack.c.l.b16 %v551
        %v620 = vunpack.c.l.b16 %v552
        %v621 = vunpack.c.l.b16 %v553
        %v622 = vunpack.c.l.b16 %v554
        %v623 = vunpack.c.l.b16 %v555
        %v624 = vunpack.c.l.b16 %v556
        %v625 = vunpack.c.l.b16 %v557
        %v626 = vunpack.c.l.b16 %v558
        %v627 = vunpack.c.l.b16 %v559
        %v628 = vunpack.c.l.b16 %v560
        %v629 = vunpack.c.l.b16 %v561
        %v630 = vunpack.c.l.b16 %v562
        %v631 = vunpack.c.l.b16 %v563
        %v632 = vunpack.c.l.b16 %v564
        %v633 = vpack.c.b16 %v602, %v601
        %v634 = vpack.c.b16 %v604, %v603
        %v635 = vpack.c.b16 %v606, %v605
        %v636 = vpack.c.b16 %v608, %v607
        %v637 = vpack.c.b16 %v610, %v609
        %v638 = vpack.c.b16 %v612, %v611
        %v639 = vpack.c.b16 %v614, %v613
        %v640 = vpack.c.b16 %v616, %v615
        %v641 = vpack.c.b16 %v618, %v617
        %v642 = vpack.c.b16 %v620, %v619
        %v643 = vpack.c.b16 %v622, %v621
        %v644 = vpack.c.b16 %v624, %v623
        %v645 = vpack.c.b16 %v626, %v625
        %v646 = vpack.c.b16 %v628, %v627
        %v647 = vpack.c.b16 %v630, %v629
        %v648 = vpack.c.b16 %v632, %v631
        %665 = vmatpush.bf16.msra.mxu0 %v640
        %666 = vmatpush.bf16.msra.mxu0 %v639
        %667 = vmatpush.bf16.msra.mxu0 %v638
        %668 = vmatpush.bf16.msra.mxu0 %v637
        %669 = vmatpush.bf16.msra.mxu0 %v636
        %670 = vmatpush.bf16.msra.mxu0 %v635
        %671 = vmatpush.bf16.msra.mxu0 %v634
        %672 = vmatpush.bf16.msra.mxu0 %v633
        %673 = vmatmul.bf16.gmra.mxu0 %v501
        %v674 = vpop.f32.mrf.mxu0
        %v675 = vadd.f32 %v567, %v674
        %v676 = vpop.f32.mrf.mxu0
        %v677 = vadd.f32 %v567, %v676
        %678 = vmatmul.bf16.gmra.mxu0 %v503
        %v679 = vpop.f32.mrf.mxu0
        %v680 = vadd.f32 %v567, %v679
        %v681 = vpop.f32.mrf.mxu0
        %v682 = vadd.f32 %v567, %v681
        %683 = vmatmul.bf16.gmra.mxu0 %v505
        %v684 = vpop.f32.mrf.mxu0
        %v685 = vadd.f32 %v567, %v684
        %v686 = vpop.f32.mrf.mxu0
        %v687 = vadd.f32 %v567, %v686
        %688 = vmatmul.bf16.gmra.mxu0 %v507
        %v689 = vpop.f32.mrf.mxu0
        %v690 = vadd.f32 %v567, %v689
        %v691 = vpop.f32.mrf.mxu0
        %v692 = vadd.f32 %v567, %v691
        %693 = vmatmul.bf16.gmra.mxu0 %v509
        %v694 = vpop.f32.mrf.mxu0
        %v695 = vadd.f32 %v567, %v694
        %v696 = vpop.f32.mrf.mxu0
        %v697 = vadd.f32 %v567, %v696
        %698 = vmatmul.bf16.gmra.mxu0 %v511
        %v699 = vpop.f32.mrf.mxu0
        %v700 = vadd.f32 %v567, %v699
        %v701 = vpop.f32.mrf.mxu0
        %v702 = vadd.f32 %v567, %v701
        %703 = vmatmul.bf16.gmra.mxu0 %v513
        %v704 = vpop.f32.mrf.mxu0
        %v705 = vadd.f32 %v567, %v704
        %v706 = vpop.f32.mrf.mxu0
        %v707 = vadd.f32 %v567, %v706
        %708 = vmatmul.bf16.gmra.mxu0 %v515
        %v709 = vpop.f32.mrf.mxu0
        %v710 = vadd.f32 %v567, %v709
        %v711 = vpop.f32.mrf.mxu0
        %v712 = vadd.f32 %v567, %v711
        %713 = vmatmul.bf16.gmra.mxu0 %v517
        %v714 = vpop.f32.mrf.mxu0
        %v715 = vadd.f32 %v567, %v714
        %v716 = vpop.f32.mrf.mxu0
        %v717 = vadd.f32 %v567, %v716
        %718 = vmatmul.bf16.gmra.mxu0 %v519
        %v719 = vpop.f32.mrf.mxu0
        %v720 = vadd.f32 %v567, %v719
        %v721 = vpop.f32.mrf.mxu0
        %v722 = vadd.f32 %v567, %v721
        %723 = vmatmul.bf16.gmra.mxu0 %v521
        %v724 = vpop.f32.mrf.mxu0
        %v725 = vadd.f32 %v567, %v724
        %v726 = vpop.f32.mrf.mxu0
        %v727 = vadd.f32 %v567, %v726
        %728 = vmatmul.bf16.gmra.mxu0 %v523
        %v729 = vpop.f32.mrf.mxu0
        %v730 = vadd.f32 %v567, %v729
        %v731 = vpop.f32.mrf.mxu0
        %v732 = vadd.f32 %v567, %v731
        %733 = vmatmul.bf16.gmra.mxu0 %v525
        %v734 = vpop.f32.mrf.mxu0
        %v735 = vadd.f32 %v567, %v734
        %v736 = vpop.f32.mrf.mxu0
        %v737 = vadd.f32 %v567, %v736
        %738 = vmatmul.bf16.gmra.mxu0 %v527
        %v739 = vpop.f32.mrf.mxu0
        %v740 = vadd.f32 %v567, %v739
        %v741 = vpop.f32.mrf.mxu0
        %v742 = vadd.f32 %v567, %v741
        %743 = vmatmul.bf16.gmra.mxu0 %v529
        %v744 = vpop.f32.mrf.mxu0
        %v745 = vadd.f32 %v567, %v744
        %v746 = vpop.f32.mrf.mxu0
        %v747 = vadd.f32 %v567, %v746
        %748 = vmatmul.bf16.gmra.mxu0 %v531
        %v749 = vpop.f32.mrf.mxu0
        %v750 = vadd.f32 %v567, %v749
        %v751 = vpop.f32.mrf.mxu0
        %v752 = vadd.f32 %v567, %v751
        %753 = vdwg.mxu0
        %754 = vmatpush.bf16.msra.mxu0 %v648
        %755 = vmatpush.bf16.msra.mxu0 %v647
        %756 = vmatpush.bf16.msra.mxu0 %v646
        %757 = vmatpush.bf16.msra.mxu0 %v645
        %758 = vmatpush.bf16.msra.mxu0 %v644
        %759 = vmatpush.bf16.msra.mxu0 %v643
        %760 = vmatpush.bf16.msra.mxu0 %v642
        %761 = vmatpush.bf16.msra.mxu0 %v641
        %762 = vmatmul.bf16.gmra.mxu0 %v502
        %v763 = vpop.f32.mrf.mxu0
        %v764 = vadd.f32 %v675, %v763
        %v765 = vpop.f32.mrf.mxu0
        %v766 = vadd.f32 %v677, %v765
        %767 = vmatmul.bf16.gmra.mxu0 %v504
        %v768 = vpop.f32.mrf.mxu0
        %v769 = vadd.f32 %v680, %v768
        %v770 = vpop.f32.mrf.mxu0
        %v771 = vadd.f32 %v682, %v770
        %772 = vmatmul.bf16.gmra.mxu0 %v506
        %v773 = vpop.f32.mrf.mxu0
        %v774 = vadd.f32 %v685, %v773
        %v775 = vpop.f32.mrf.mxu0
        %v776 = vadd.f32 %v687, %v775
        %777 = vmatmul.bf16.gmra.mxu0 %v508
        %v778 = vpop.f32.mrf.mxu0
        %v779 = vadd.f32 %v690, %v778
        %v780 = vpop.f32.mrf.mxu0
        %v781 = vadd.f32 %v692, %v780
        %782 = vmatmul.bf16.gmra.mxu0 %v510
        %v783 = vpop.f32.mrf.mxu0
        %v784 = vadd.f32 %v695, %v783
        %v785 = vpop.f32.mrf.mxu0
        %v786 = vadd.f32 %v697, %v785
        %787 = vmatmul.bf16.gmra.mxu0 %v512
        %v788 = vpop.f32.mrf.mxu0
        %v789 = vadd.f32 %v700, %v788
        %v790 = vpop.f32.mrf.mxu0
        %v791 = vadd.f32 %v702, %v790
        %792 = vmatmul.bf16.gmra.mxu0 %v514
        %v793 = vpop.f32.mrf.mxu0
        %v794 = vadd.f32 %v705, %v793
        %v795 = vpop.f32.mrf.mxu0
        %v796 = vadd.f32 %v707, %v795
        %797 = vmatmul.bf16.gmra.mxu0 %v516
        %v798 = vpop.f32.mrf.mxu0
        %v799 = vadd.f32 %v710, %v798
        %v800 = vpop.f32.mrf.mxu0
        %v801 = vadd.f32 %v712, %v800
        %802 = vmatmul.bf16.gmra.mxu0 %v518
        %v803 = vpop.f32.mrf.mxu0
        %v804 = vadd.f32 %v715, %v803
        %v805 = vpop.f32.mrf.mxu0
        %v806 = vadd.f32 %v717, %v805
        %807 = vmatmul.bf16.gmra.mxu0 %v520
        %v808 = vpop.f32.mrf.mxu0
        %v809 = vadd.f32 %v720, %v808
        %v810 = vpop.f32.mrf.mxu0
        %v811 = vadd.f32 %v722, %v810
        %812 = vmatmul.bf16.gmra.mxu0 %v522
        %v813 = vpop.f32.mrf.mxu0
        %v814 = vadd.f32 %v725, %v813
        %v815 = vpop.f32.mrf.mxu0
        %v816 = vadd.f32 %v727, %v815
        %817 = vmatmul.bf16.gmra.mxu0 %v524
        %v818 = vpop.f32.mrf.mxu0
        %v819 = vadd.f32 %v730, %v818
        %v820 = vpop.f32.mrf.mxu0
        %v821 = vadd.f32 %v732, %v820
        %822 = vmatmul.bf16.gmra.mxu0 %v526
        %v823 = vpop.f32.mrf.mxu0
        %v824 = vadd.f32 %v735, %v823
        %v825 = vpop.f32.mrf.mxu0
        %v826 = vadd.f32 %v737, %v825
        %827 = vmatmul.bf16.gmra.mxu0 %v528
        %v828 = vpop.f32.mrf.mxu0
        %v829 = vadd.f32 %v740, %v828
        %v830 = vpop.f32.mrf.mxu0
        %v831 = vadd.f32 %v742, %v830
        %832 = vmatmul.bf16.gmra.mxu0 %v530
        %v833 = vpop.f32.mrf.mxu0
        %v834 = vadd.f32 %v745, %v833
        %v835 = vpop.f32.mrf.mxu0
        %v836 = vadd.f32 %v747, %v835
        %837 = vmatmul.bf16.gmra.mxu0 %v532
        %v838 = vpop.f32.mrf.mxu0
        %v839 = vadd.f32 %v750, %v838
        %v840 = vpop.f32.mrf.mxu0
        %v841 = vadd.f32 %v752, %v840
        %842 = vdwg.mxu0
        %v843 = vmax.f32 %v764, 0.0
        %v844 = vmax.f32 %v766, 0.0
        %v845 = vmax.f32 %v769, 0.0
        %v846 = vmax.f32 %v771, 0.0
        %v847 = vmax.f32 %v774, 0.0
        %v848 = vmax.f32 %v776, 0.0
        %v849 = vmax.f32 %v779, 0.0
        %v850 = vmax.f32 %v781, 0.0
        %v851 = vmax.f32 %v784, 0.0
        %v852 = vmax.f32 %v786, 0.0
        %v853 = vmax.f32 %v789, 0.0
        %v854 = vmax.f32 %v791, 0.0
        %v855 = vmax.f32 %v794, 0.0
        %v856 = vmax.f32 %v796, 0.0
        %v857 = vmax.f32 %v799, 0.0
        %v858 = vmax.f32 %v801, 0.0
        %v859 = vmax.f32 %v804, 0.0
        %v860 = vmax.f32 %v806, 0.0
        %v861 = vmax.f32 %v809, 0.0
        %v862 = vmax.f32 %v811, 0.0
        %v863 = vmax.f32 %v814, 0.0
        %v864 = vmax.f32 %v816, 0.0
        %v865 = vmax.f32 %v819, 0.0
        %v866 = vmax.f32 %v821, 0.0
        %v867 = vmax.f32 %v824, 0.0
        %v868 = vmax.f32 %v826, 0.0
        %v869 = vmax.f32 %v829, 0.0
        %v870 = vmax.f32 %v831, 0.0
        %v871 = vmax.f32 %v834, 0.0
        %v872 = vmax.f32 %v836, 0.0
        %v873 = vmax.f32 %v839, 0.0
        %v874 = vmax.f32 %v841, 0.0
        %v875 = vpack.c.bf16 %v844, %v843
        %v876 = vpack.c.bf16 %v846, %v845
        %v877 = vpack.c.bf16 %v848, %v847
        %v878 = vpack.c.bf16 %v850, %v849
        %v879 = vpack.c.bf16 %v852, %v851
        %v880 = vpack.c.bf16 %v854, %v853
        %v881 = vpack.c.bf16 %v856, %v855
        %v882 = vpack.c.bf16 %v858, %v857
        %v883 = vpack.c.bf16 %v860, %v859
        %v884 = vpack.c.bf16 %v862, %v861
        %v885 = vpack.c.bf16 %v864, %v863
        %v886 = vpack.c.bf16 %v866, %v865
        %v887 = vpack.c.bf16 %v868, %v867
        %v888 = vpack.c.bf16 %v870, %v869
        %v889 = vpack.c.bf16 %v872, %v871
        %v890 = vpack.c.bf16 %v874, %v873
        %v891 = vld [vmem:[#allocation7] sm:$0xf]
        %v892 = vld [vmem:[#allocation7 + $0x4] sm:$0xf]
        %v893 = vld [vmem:[#allocation7 + $0x8] sm:$0xf]
        %v894 = vld [vmem:[#allocation7 + $0xc] sm:$0xf]
        %v895 = vld [vmem:[#allocation7 + $0x10] sm:$0xf]
        %v896 = vld [vmem:[#allocation7 + $0x14] sm:$0xf]
        %v897 = vld [vmem:[#allocation7 + $0x18] sm:$0xf]
        %v898 = vld [vmem:[#allocation7 + $0x1c] sm:$0xf]
        %v899 = vld [vmem:[#allocation7 + $0x20] sm:$0xf]
        %v900 = vld [vmem:[#allocation7 + $0x24] sm:$0xf]
        %v901 = vld [vmem:[#allocation7 + $0x28] sm:$0xf]
        %v902 = vld [vmem:[#allocation7 + $0x2c] sm:$0xf]
        %v903 = vld [vmem:[#allocation7 + $0x30] sm:$0xf]
        %v904 = vld [vmem:[#allocation7 + $0x34] sm:$0xf]
        %v905 = vld [vmem:[#allocation7 + $0x38] sm:$0xf]
        %v906 = vld [vmem:[#allocation7 + $0x3c] sm:$0xf]
        %v907 = vld [vmem:[#allocation8] sm:$0x1]
        %v909 = vperm.slane %v907, 0
        %v927 = vunpack.c.l.b16 %v891
        %v928 = vunpack.c.l.b16 %v892
        %v929 = vunpack.c.l.b16 %v893
        %v930 = vunpack.c.l.b16 %v894
        %v931 = vunpack.c.l.b16 %v895
        %v932 = vunpack.c.l.b16 %v896
        %v933 = vunpack.c.l.b16 %v897
        %v934 = vunpack.c.l.b16 %v898
        %v935 = vunpack.c.l.b16 %v899
        %v936 = vunpack.c.l.b16 %v900
        %v937 = vunpack.c.l.b16 %v901
        %v938 = vunpack.c.l.b16 %v902
        %v939 = vunpack.c.l.b16 %v903
        %v940 = vunpack.c.l.b16 %v904
        %v941 = vunpack.c.l.b16 %v905
        %v942 = vunpack.c.l.b16 %v906
        %v943 = vpack.c.b16 %v928, %v927
        %v944 = vpack.c.b16 %v930, %v929
        %v945 = vpack.c.b16 %v932, %v931
        %v946 = vpack.c.b16 %v934, %v933
        %v947 = vpack.c.b16 %v936, %v935
        %v948 = vpack.c.b16 %v938, %v937
        %v949 = vpack.c.b16 %v940, %v939
        %v950 = vpack.c.b16 %v942, %v941
        %959 = vmatpush.bf16.msra.mxu0 %v950
        %960 = vmatpush.bf16.msra.mxu0 %v949
        %961 = vmatpush.bf16.msra.mxu0 %v948
        %962 = vmatpush.bf16.msra.mxu0 %v947
        %963 = vmatpush.bf16.msra.mxu0 %v946
        %964 = vmatpush.bf16.msra.mxu0 %v945
        %965 = vmatpush.bf16.msra.mxu0 %v944
        %966 = vmatpush.bf16.msra.mxu0 %v943
        %967 = vmatmul.bf16.gmra.mxu0 %v875
        %v968 = vpop.f32.mrf.mxu0
        %v969 = vadd.f32 %v909, %v968
        %v970 = vpop.f32.mrf.mxu0
        %v971 = vadd.f32 %v909, %v970
        %972 = vmatmul.bf16.gmra.mxu0 %v876
        %v973 = vpop.f32.mrf.mxu0
        %v974 = vadd.f32 %v909, %v973
        %v975 = vpop.f32.mrf.mxu0
        %v976 = vadd.f32 %v909, %v975
        %977 = vmatmul.bf16.gmra.mxu0 %v877
        %v978 = vpop.f32.mrf.mxu0
        %v979 = vadd.f32 %v909, %v978
        %v980 = vpop.f32.mrf.mxu0
        %v981 = vadd.f32 %v909, %v980
        %982 = vmatmul.bf16.gmra.mxu0 %v878
        %v983 = vpop.f32.mrf.mxu0
        %v984 = vadd.f32 %v909, %v983
        %v985 = vpop.f32.mrf.mxu0
        %v986 = vadd.f32 %v909, %v985
        %987 = vmatmul.bf16.gmra.mxu0 %v879
        %v988 = vpop.f32.mrf.mxu0
        %v989 = vadd.f32 %v909, %v988
        %v990 = vpop.f32.mrf.mxu0
        %v991 = vadd.f32 %v909, %v990
        %992 = vmatmul.bf16.gmra.mxu0 %v880
        %v993 = vpop.f32.mrf.mxu0
        %v994 = vadd.f32 %v909, %v993
        %v995 = vpop.f32.mrf.mxu0
        %v996 = vadd.f32 %v909, %v995
        %997 = vmatmul.bf16.gmra.mxu0 %v881
        %v998 = vpop.f32.mrf.mxu0
        %v999 = vadd.f32 %v909, %v998
        %v1000 = vpop.f32.mrf.mxu0
        %v1001 = vadd.f32 %v909, %v1000
        %1002 = vmatmul.bf16.gmra.mxu0 %v882
        %v1003 = vpop.f32.mrf.mxu0
        %v1004 = vadd.f32 %v909, %v1003
        %v1005 = vpop.f32.mrf.mxu0
        %v1006 = vadd.f32 %v909, %v1005
        %1007 = vmatmul.bf16.gmra.mxu0 %v883
        %v1008 = vpop.f32.mrf.mxu0
        %v1009 = vadd.f32 %v909, %v1008
        %v1010 = vpop.f32.mrf.mxu0
        %v1011 = vadd.f32 %v909, %v1010
        %1012 = vmatmul.bf16.gmra.mxu0 %v884
        %v1013 = vpop.f32.mrf.mxu0
        %v1014 = vadd.f32 %v909, %v1013
        %v1015 = vpop.f32.mrf.mxu0
        %v1016 = vadd.f32 %v909, %v1015
        %1017 = vmatmul.bf16.gmra.mxu0 %v885
        %v1018 = vpop.f32.mrf.mxu0
        %v1019 = vadd.f32 %v909, %v1018
        %v1020 = vpop.f32.mrf.mxu0
        %v1021 = vadd.f32 %v909, %v1020
        %1022 = vmatmul.bf16.gmra.mxu0 %v886
        %v1023 = vpop.f32.mrf.mxu0
        %v1024 = vadd.f32 %v909, %v1023
        %v1025 = vpop.f32.mrf.mxu0
        %v1026 = vadd.f32 %v909, %v1025
        %1027 = vmatmul.bf16.gmra.mxu0 %v887
        %v1028 = vpop.f32.mrf.mxu0
        %v1029 = vadd.f32 %v909, %v1028
        %v1030 = vpop.f32.mrf.mxu0
        %v1031 = vadd.f32 %v909, %v1030
        %1032 = vmatmul.bf16.gmra.mxu0 %v888
        %v1033 = vpop.f32.mrf.mxu0
        %v1034 = vadd.f32 %v909, %v1033
        %v1035 = vpop.f32.mrf.mxu0
        %v1036 = vadd.f32 %v909, %v1035
        %1037 = vmatmul.bf16.gmra.mxu0 %v889
        %v1038 = vpop.f32.mrf.mxu0
        %v1039 = vadd.f32 %v909, %v1038
        %v1040 = vpop.f32.mrf.mxu0
        %v1041 = vadd.f32 %v909, %v1040
        %1042 = vmatmul.bf16.gmra.mxu0 %v890
        %v1043 = vpop.f32.mrf.mxu0
        %v1044 = vadd.f32 %v909, %v1043
        %v1045 = vpop.f32.mrf.mxu0
        %v1046 = vadd.f32 %v909, %v1045
        %1047 = vdwg.mxu0
        %v1048 = vmax.f32 %v969, 0.0
        %v1049 = vmax.f32 %v971, 0.0
        %v1050 = vmax.f32 %v974, 0.0
        %v1051 = vmax.f32 %v976, 0.0
        %v1052 = vmax.f32 %v979, 0.0
        %v1053 = vmax.f32 %v981, 0.0
        %v1054 = vmax.f32 %v984, 0.0
        %v1055 = vmax.f32 %v986, 0.0
        %v1056 = vmax.f32 %v989, 0.0
        %v1057 = vmax.f32 %v991, 0.0
        %v1058 = vmax.f32 %v994, 0.0
        %v1059 = vmax.f32 %v996, 0.0
        %v1060 = vmax.f32 %v999, 0.0
        %v1061 = vmax.f32 %v1001, 0.0
        %v1062 = vmax.f32 %v1004, 0.0
        %v1063 = vmax.f32 %v1006, 0.0
        %v1064 = vmax.f32 %v1009, 0.0
        %v1065 = vmax.f32 %v1011, 0.0
        %v1066 = vmax.f32 %v1014, 0.0
        %v1067 = vmax.f32 %v1016, 0.0
        %v1068 = vmax.f32 %v1019, 0.0
        %v1069 = vmax.f32 %v1021, 0.0
        %v1070 = vmax.f32 %v1024, 0.0
        %v1071 = vmax.f32 %v1026, 0.0
        %v1072 = vmax.f32 %v1029, 0.0
        %v1073 = vmax.f32 %v1031, 0.0
        %v1074 = vmax.f32 %v1034, 0.0
        %v1075 = vmax.f32 %v1036, 0.0
        %v1076 = vmax.f32 %v1039, 0.0
        %v1077 = vmax.f32 %v1041, 0.0
        %v1078 = vmax.f32 %v1044, 0.0
        %v1079 = vmax.f32 %v1046, 0.0
        %v1080 = vpack.c.bf16 %v1049, %v1048
        %v1081 = vpack.c.bf16 %v1051, %v1050
        %v1082 = vpack.c.bf16 %v1053, %v1052
        %v1083 = vpack.c.bf16 %v1055, %v1054
        %v1084 = vpack.c.bf16 %v1057, %v1056
        %v1085 = vpack.c.bf16 %v1059, %v1058
        %v1086 = vpack.c.bf16 %v1061, %v1060
        %v1087 = vpack.c.bf16 %v1063, %v1062
        %v1088 = vpack.c.bf16 %v1065, %v1064
        %v1089 = vpack.c.bf16 %v1067, %v1066
        %v1090 = vpack.c.bf16 %v1069, %v1068
        %v1091 = vpack.c.bf16 %v1071, %v1070
        %v1092 = vpack.c.bf16 %v1073, %v1072
        %v1093 = vpack.c.bf16 %v1075, %v1074
        %v1094 = vpack.c.bf16 %v1077, %v1076
        %v1095 = vpack.c.bf16 %v1079, %v1078
        %v1096 = vld [vmem:[#allocation10] sm:$0xf]
        %v1097 = vld [vmem:[#allocation10 + $0x4] sm:$0xf]
        %v1098 = vld [vmem:[#allocation10 + $0x8] sm:$0xf]
        %v1099 = vld [vmem:[#allocation10 + $0xc] sm:$0xf]
        %v1100 = vld [vmem:[#allocation10 + $0x10] sm:$0xf]
        %v1101 = vld [vmem:[#allocation10 + $0x14] sm:$0xf]
        %v1102 = vld [vmem:[#allocation10 + $0x18] sm:$0xf]
        %v1103 = vld [vmem:[#allocation10 + $0x1c] sm:$0xf]
        %v1104 = vld [vmem:[#allocation10 + $0x20] sm:$0xf]
        %v1105 = vld [vmem:[#allocation10 + $0x24] sm:$0xf]
        %v1106 = vld [vmem:[#allocation10 + $0x28] sm:$0xf]
        %v1107 = vld [vmem:[#allocation10 + $0x2c] sm:$0xf]
        %v1108 = vld [vmem:[#allocation10 + $0x30] sm:$0xf]
        %v1109 = vld [vmem:[#allocation10 + $0x34] sm:$0xf]
        %v1110 = vld [vmem:[#allocation10 + $0x38] sm:$0xf]
        %v1111 = vld [vmem:[#allocation10 + $0x3c] sm:$0xf]
        %v1112 = vld [vmem:[%s6] sm:$0x1]
        %v1114 = vperm.slane %v1112, 0
        %v1132 = vunpack.c.l.b16 %v1096
        %v1133 = vunpack.c.l.b16 %v1097
        %v1134 = vunpack.c.l.b16 %v1098
        %v1135 = vunpack.c.l.b16 %v1099
        %v1136 = vunpack.c.l.b16 %v1100
        %v1137 = vunpack.c.l.b16 %v1101
        %v1138 = vunpack.c.l.b16 %v1102
        %v1139 = vunpack.c.l.b16 %v1103
        %v1140 = vunpack.c.l.b16 %v1104
        %v1141 = vunpack.c.l.b16 %v1105
        %v1142 = vunpack.c.l.b16 %v1106
        %v1143 = vunpack.c.l.b16 %v1107
        %v1144 = vunpack.c.l.b16 %v1108
        %v1145 = vunpack.c.l.b16 %v1109
        %v1146 = vunpack.c.l.b16 %v1110
        %v1147 = vunpack.c.l.b16 %v1111
        %v1148 = vpack.c.b16 %v1133, %v1132
        %v1149 = vpack.c.b16 %v1135, %v1134
        %v1150 = vpack.c.b16 %v1137, %v1136
        %v1151 = vpack.c.b16 %v1139, %v1138
        %v1152 = vpack.c.b16 %v1141, %v1140
        %v1153 = vpack.c.b16 %v1143, %v1142
        %v1154 = vpack.c.b16 %v1145, %v1144
        %v1155 = vpack.c.b16 %v1147, %v1146
        %1164 = vmatpush.bf16.msra.mxu0 %v1155
        %1165 = vmatpush.bf16.msra.mxu0 %v1154
        %1166 = vmatpush.bf16.msra.mxu0 %v1153
        %1167 = vmatpush.bf16.msra.mxu0 %v1152
        %1168 = vmatpush.bf16.msra.mxu0 %v1151
        %1169 = vmatpush.bf16.msra.mxu0 %v1150
        %1170 = vmatpush.bf16.msra.mxu0 %v1149
        %1171 = vmatpush.bf16.msra.mxu0 %v1148
        %1172 = vmatmul.bf16.gmra.mxu0 %v1080
        %v1173 = vpop.f32.mrf.mxu0
        %v1174 = vadd.f32 %v1114, %v1173
        %v1175 = vpop.f32.mrf.mxu0
        %v1176 = vadd.f32 %v1114, %v1175
        %1177 = vmatmul.bf16.gmra.mxu0 %v1081
        %v1178 = vpop.f32.mrf.mxu0
        %v1179 = vadd.f32 %v1114, %v1178
        %v1180 = vpop.f32.mrf.mxu0
        %v1181 = vadd.f32 %v1114, %v1180
        %1182 = vmatmul.bf16.gmra.mxu0 %v1082
        %v1183 = vpop.f32.mrf.mxu0
        %v1184 = vadd.f32 %v1114, %v1183
        %v1185 = vpop.f32.mrf.mxu0
        %v1186 = vadd.f32 %v1114, %v1185
        %1187 = vmatmul.bf16.gmra.mxu0 %v1083
        %v1188 = vpop.f32.mrf.mxu0
        %v1189 = vadd.f32 %v1114, %v1188
        %v1190 = vpop.f32.mrf.mxu0
        %v1191 = vadd.f32 %v1114, %v1190
        %1192 = vmatmul.bf16.gmra.mxu0 %v1084
        %v1193 = vpop.f32.mrf.mxu0
        %v1194 = vadd.f32 %v1114, %v1193
        %v1195 = vpop.f32.mrf.mxu0
        %v1196 = vadd.f32 %v1114, %v1195
        %1197 = vmatmul.bf16.gmra.mxu0 %v1085
        %v1198 = vpop.f32.mrf.mxu0
        %v1199 = vadd.f32 %v1114, %v1198
        %v1200 = vpop.f32.mrf.mxu0
        %v1201 = vadd.f32 %v1114, %v1200
        %1202 = vmatmul.bf16.gmra.mxu0 %v1086
        %v1203 = vpop.f32.mrf.mxu0
        %v1204 = vadd.f32 %v1114, %v1203
        %v1205 = vpop.f32.mrf.mxu0
        %v1206 = vadd.f32 %v1114, %v1205
        %1207 = vmatmul.bf16.gmra.mxu0 %v1087
        %v1208 = vpop.f32.mrf.mxu0
        %v1209 = vadd.f32 %v1114, %v1208
        %v1210 = vpop.f32.mrf.mxu0
        %v1211 = vadd.f32 %v1114, %v1210
        %1212 = vmatmul.bf16.gmra.mxu0 %v1088
        %v1213 = vpop.f32.mrf.mxu0
        %v1214 = vadd.f32 %v1114, %v1213
        %v1215 = vpop.f32.mrf.mxu0
        %v1216 = vadd.f32 %v1114, %v1215
        %1217 = vmatmul.bf16.gmra.mxu0 %v1089
        %v1218 = vpop.f32.mrf.mxu0
        %v1219 = vadd.f32 %v1114, %v1218
        %v1220 = vpop.f32.mrf.mxu0
        %v1221 = vadd.f32 %v1114, %v1220
        %1222 = vmatmul.bf16.gmra.mxu0 %v1090
        %v1223 = vpop.f32.mrf.mxu0
        %v1224 = vadd.f32 %v1114, %v1223
        %v1225 = vpop.f32.mrf.mxu0
        %v1226 = vadd.f32 %v1114, %v1225
        %1227 = vmatmul.bf16.gmra.mxu0 %v1091
        %v1228 = vpop.f32.mrf.mxu0
        %v1229 = vadd.f32 %v1114, %v1228
        %v1230 = vpop.f32.mrf.mxu0
        %v1231 = vadd.f32 %v1114, %v1230
        %1232 = vmatmul.bf16.gmra.mxu0 %v1092
        %v1233 = vpop.f32.mrf.mxu0
        %v1234 = vadd.f32 %v1114, %v1233
        %v1235 = vpop.f32.mrf.mxu0
        %v1236 = vadd.f32 %v1114, %v1235
        %1237 = vmatmul.bf16.gmra.mxu0 %v1093
        %v1238 = vpop.f32.mrf.mxu0
        %v1239 = vadd.f32 %v1114, %v1238
        %v1240 = vpop.f32.mrf.mxu0
        %v1241 = vadd.f32 %v1114, %v1240
        %1242 = vmatmul.bf16.gmra.mxu0 %v1094
        %v1243 = vpop.f32.mrf.mxu0
        %v1244 = vadd.f32 %v1114, %v1243
        %v1245 = vpop.f32.mrf.mxu0
        %v1246 = vadd.f32 %v1114, %v1245
        %1247 = vmatmul.bf16.gmra.mxu0 %v1095
        %v1248 = vpop.f32.mrf.mxu0
        %v1249 = vadd.f32 %v1114, %v1248
        %v1250 = vpop.f32.mrf.mxu0
        %v1251 = vadd.f32 %v1114, %v1250
        %1252 = vdwg.mxu0
        %v1253 = vmax.f32 %v1174, 0.0
        %v1254 = vmax.f32 %v1176, 0.0
        %v1255 = vmax.f32 %v1179, 0.0
        %v1256 = vmax.f32 %v1181, 0.0
        %v1257 = vmax.f32 %v1184, 0.0
        %v1258 = vmax.f32 %v1186, 0.0
        %v1259 = vmax.f32 %v1189, 0.0
        %v1260 = vmax.f32 %v1191, 0.0
        %v1261 = vmax.f32 %v1194, 0.0
        %v1262 = vmax.f32 %v1196, 0.0
        %v1263 = vmax.f32 %v1199, 0.0
        %v1264 = vmax.f32 %v1201, 0.0
        %v1265 = vmax.f32 %v1204, 0.0
        %v1266 = vmax.f32 %v1206, 0.0
        %v1267 = vmax.f32 %v1209, 0.0
        %v1268 = vmax.f32 %v1211, 0.0
        %v1269 = vmax.f32 %v1214, 0.0
        %v1270 = vmax.f32 %v1216, 0.0
        %v1271 = vmax.f32 %v1219, 0.0
        %v1272 = vmax.f32 %v1221, 0.0
        %v1273 = vmax.f32 %v1224, 0.0
        %v1274 = vmax.f32 %v1226, 0.0
        %v1275 = vmax.f32 %v1229, 0.0
        %v1276 = vmax.f32 %v1231, 0.0
        %v1277 = vmax.f32 %v1234, 0.0
        %v1278 = vmax.f32 %v1236, 0.0
        %v1279 = vmax.f32 %v1239, 0.0
        %v1280 = vmax.f32 %v1241, 0.0
        %v1281 = vmax.f32 %v1244, 0.0
        %v1282 = vmax.f32 %v1246, 0.0
        %v1283 = vmax.f32 %v1249, 0.0
        %v1284 = vmax.f32 %v1251, 0.0
        %v1285 = vpack.c.bf16 %v1254, %v1253
        %v1286 = vpack.c.bf16 %v1256, %v1255
        %v1287 = vpack.c.bf16 %v1258, %v1257
        %v1288 = vpack.c.bf16 %v1260, %v1259
        %v1289 = vpack.c.bf16 %v1262, %v1261
        %v1290 = vpack.c.bf16 %v1264, %v1263
        %v1291 = vpack.c.bf16 %v1266, %v1265
        %v1292 = vpack.c.bf16 %v1268, %v1267
        %v1293 = vpack.c.bf16 %v1270, %v1269
        %v1294 = vpack.c.bf16 %v1272, %v1271
        %v1295 = vpack.c.bf16 %v1274, %v1273
        %v1296 = vpack.c.bf16 %v1276, %v1275
        %v1297 = vpack.c.bf16 %v1278, %v1277
        %v1298 = vpack.c.bf16 %v1280, %v1279
        %v1299 = vpack.c.bf16 %v1282, %v1281
        %v1300 = vpack.c.bf16 %v1284, %v1283
        %v1301 = vld [vmem:[#allocation11] sm:$0xff]
        %v1302 = vld [vmem:[#allocation11 + $0x8] sm:$0xff]
        %v1303 = vld [vmem:[#allocation11 + $0x10] sm:$0xff]
        %v1304 = vld [vmem:[#allocation11 + $0x18] sm:$0xff]
        %v1305 = vld [vmem:[#allocation11 + $0x20] sm:$0xff]
        %v1306 = vld [vmem:[#allocation11 + $0x28] sm:$0xff]
        %v1307 = vld [vmem:[#allocation11 + $0x30] sm:$0xff]
        %v1308 = vld [vmem:[#allocation11 + $0x38] sm:$0xff]
        %v1309 = vld [vmem:[#allocation11 + $0x40] sm:$0xff]
        %v1310 = vld [vmem:[#allocation11 + $0x48] sm:$0xff]
        %v1311 = vld [vmem:[#allocation11 + $0x50] sm:$0xff]
        %v1312 = vld [vmem:[#allocation11 + $0x58] sm:$0xff]
        %v1313 = vld [vmem:[#allocation11 + $0x60] sm:$0xff]
        %v1314 = vld [vmem:[#allocation11 + $0x68] sm:$0xff]
        %v1315 = vld [vmem:[#allocation11 + $0x70] sm:$0xff]
        %v1316 = vld [vmem:[#allocation11 + $0x78] sm:$0xff]
        %v1317 = vld [vmem:[%s8] sm:$0x3]
        %v1319 = vperm.slane %v1317, 0
        %v1320 = vperm.slane %v1317, 1
        %v1339 = vunpack.c.l.b16 %v1301
        %v1340 = vunpack.c.h.b16 %v1301
        %v1341 = vunpack.c.l.b16 %v1302
        %v1342 = vunpack.c.h.b16 %v1302
        %v1343 = vunpack.c.l.b16 %v1303
        %v1344 = vunpack.c.h.b16 %v1303
        %v1345 = vunpack.c.l.b16 %v1304
        %v1346 = vunpack.c.h.b16 %v1304
        %v1347 = vunpack.c.l.b16 %v1305
        %v1348 = vunpack.c.h.b16 %v1305
        %v1349 = vunpack.c.l.b16 %v1306
        %v1350 = vunpack.c.h.b16 %v1306
        %v1351 = vunpack.c.l.b16 %v1307
        %v1352 = vunpack.c.h.b16 %v1307
        %v1353 = vunpack.c.l.b16 %v1308
        %v1354 = vunpack.c.h.b16 %v1308
        %v1355 = vunpack.c.l.b16 %v1309
        %v1356 = vunpack.c.h.b16 %v1309
        %v1357 = vunpack.c.l.b16 %v1310
        %v1358 = vunpack.c.h.b16 %v1310
        %v1359 = vunpack.c.l.b16 %v1311
        %v1360 = vunpack.c.h.b16 %v1311
        %v1361 = vunpack.c.l.b16 %v1312
        %v1362 = vunpack.c.h.b16 %v1312
        %v1363 = vunpack.c.l.b16 %v1313
        %v1364 = vunpack.c.h.b16 %v1313
        %v1365 = vunpack.c.l.b16 %v1314
        %v1366 = vunpack.c.h.b16 %v1314
        %v1367 = vunpack.c.l.b16 %v1315
        %v1368 = vunpack.c.h.b16 %v1315
        %v1369 = vunpack.c.l.b16 %v1316
        %v1370 = vunpack.c.h.b16 %v1316
        %v1371 = vpack.c.b16 %v1341, %v1339
        %v1372 = vpack.c.b16 %v1342, %v1340
        %v1373 = vpack.c.b16 %v1345, %v1343
        %v1374 = vpack.c.b16 %v1346, %v1344
        %v1375 = vpack.c.b16 %v1349, %v1347
        %v1376 = vpack.c.b16 %v1350, %v1348
        %v1377 = vpack.c.b16 %v1353, %v1351
        %v1378 = vpack.c.b16 %v1354, %v1352
        %v1379 = vpack.c.b16 %v1357, %v1355
        %v1380 = vpack.c.b16 %v1358, %v1356
        %v1381 = vpack.c.b16 %v1361, %v1359
        %v1382 = vpack.c.b16 %v1362, %v1360
        %v1383 = vpack.c.b16 %v1365, %v1363
        %v1384 = vpack.c.b16 %v1366, %v1364
        %v1385 = vpack.c.b16 %v1369, %v1367
        %v1386 = vpack.c.b16 %v1370, %v1368
        %1403 = vmatpush.bf16.msra.mxu0 %v1385
        %1404 = vmatpush.bf16.msra.mxu0 %v1383
        %1405 = vmatpush.bf16.msra.mxu0 %v1381
        %1406 = vmatpush.bf16.msra.mxu0 %v1379
        %1407 = vmatpush.bf16.msra.mxu0 %v1377
        %1408 = vmatpush.bf16.msra.mxu0 %v1375
        %1409 = vmatpush.bf16.msra.mxu0 %v1373
        %1410 = vmatpush.bf16.msra.mxu0 %v1371
        %1411 = vmatmul.bf16.gmra.mxu0 %v1285
        %v1412 = vpop.f32.mrf.mxu0
        %v1413 = vadd.f32 %v1319, %v1412
        %v1414 = vpop.f32.mrf.mxu0
        %v1415 = vadd.f32 %v1319, %v1414
        %1416 = vmatmul.bf16.gmra.mxu0 %v1286
        %v1417 = vpop.f32.mrf.mxu0
        %v1418 = vadd.f32 %v1319, %v1417
        %v1419 = vpop.f32.mrf.mxu0
        %v1420 = vadd.f32 %v1319, %v1419
        %1421 = vmatmul.bf16.gmra.mxu0 %v1287
        %v1422 = vpop.f32.mrf.mxu0
        %v1423 = vadd.f32 %v1319, %v1422
        %v1424 = vpop.f32.mrf.mxu0
        %v1425 = vadd.f32 %v1319, %v1424
        %1426 = vmatmul.bf16.gmra.mxu0 %v1288
        %v1427 = vpop.f32.mrf.mxu0
        %v1428 = vadd.f32 %v1319, %v1427
        %v1429 = vpop.f32.mrf.mxu0
        %v1430 = vadd.f32 %v1319, %v1429
        %1431 = vmatmul.bf16.gmra.mxu0 %v1289
        %v1432 = vpop.f32.mrf.mxu0
        %v1433 = vadd.f32 %v1319, %v1432
        %v1434 = vpop.f32.mrf.mxu0
        %v1435 = vadd.f32 %v1319, %v1434
        %1436 = vmatmul.bf16.gmra.mxu0 %v1290
        %v1437 = vpop.f32.mrf.mxu0
        %v1438 = vadd.f32 %v1319, %v1437
        %v1439 = vpop.f32.mrf.mxu0
        %v1440 = vadd.f32 %v1319, %v1439
        %1441 = vmatmul.bf16.gmra.mxu0 %v1291
        %v1442 = vpop.f32.mrf.mxu0
        %v1443 = vadd.f32 %v1319, %v1442
        %v1444 = vpop.f32.mrf.mxu0
        %v1445 = vadd.f32 %v1319, %v1444
        %1446 = vmatmul.bf16.gmra.mxu0 %v1292
        %v1447 = vpop.f32.mrf.mxu0
        %v1448 = vadd.f32 %v1319, %v1447
        %v1449 = vpop.f32.mrf.mxu0
        %v1450 = vadd.f32 %v1319, %v1449
        %1451 = vmatmul.bf16.gmra.mxu0 %v1293
        %v1452 = vpop.f32.mrf.mxu0
        %v1453 = vadd.f32 %v1319, %v1452
        %v1454 = vpop.f32.mrf.mxu0
        %v1455 = vadd.f32 %v1319, %v1454
        %1456 = vmatmul.bf16.gmra.mxu0 %v1294
        %v1457 = vpop.f32.mrf.mxu0
        %v1458 = vadd.f32 %v1319, %v1457
        %v1459 = vpop.f32.mrf.mxu0
        %v1460 = vadd.f32 %v1319, %v1459
        %1461 = vmatmul.bf16.gmra.mxu0 %v1295
        %v1462 = vpop.f32.mrf.mxu0
        %v1463 = vadd.f32 %v1319, %v1462
        %v1464 = vpop.f32.mrf.mxu0
        %v1465 = vadd.f32 %v1319, %v1464
        %1466 = vmatmul.bf16.gmra.mxu0 %v1296
        %v1467 = vpop.f32.mrf.mxu0
        %v1468 = vadd.f32 %v1319, %v1467
        %v1469 = vpop.f32.mrf.mxu0
        %v1470 = vadd.f32 %v1319, %v1469
        %1471 = vmatmul.bf16.gmra.mxu0 %v1297
        %v1472 = vpop.f32.mrf.mxu0
        %v1473 = vadd.f32 %v1319, %v1472
        %v1474 = vpop.f32.mrf.mxu0
        %v1475 = vadd.f32 %v1319, %v1474
        %1476 = vmatmul.bf16.gmra.mxu0 %v1298
        %v1477 = vpop.f32.mrf.mxu0
        %v1478 = vadd.f32 %v1319, %v1477
        %v1479 = vpop.f32.mrf.mxu0
        %v1480 = vadd.f32 %v1319, %v1479
        %1481 = vmatmul.bf16.gmra.mxu0 %v1299
        %v1482 = vpop.f32.mrf.mxu0
        %v1483 = vadd.f32 %v1319, %v1482
        %v1484 = vpop.f32.mrf.mxu0
        %v1485 = vadd.f32 %v1319, %v1484
        %1486 = vmatmul.bf16.gmra.mxu0 %v1300
        %v1487 = vpop.f32.mrf.mxu0
        %v1488 = vadd.f32 %v1319, %v1487
        %v1489 = vpop.f32.mrf.mxu0
        %v1490 = vadd.f32 %v1319, %v1489
        %1491 = vdwg.mxu0
        %1492 = vmatpush.bf16.msra.mxu0 %v1386
        %1493 = vmatpush.bf16.msra.mxu0 %v1384
        %1494 = vmatpush.bf16.msra.mxu0 %v1382
        %1495 = vmatpush.bf16.msra.mxu0 %v1380
        %1496 = vmatpush.bf16.msra.mxu0 %v1378
        %1497 = vmatpush.bf16.msra.mxu0 %v1376
        %1498 = vmatpush.bf16.msra.mxu0 %v1374
        %1499 = vmatpush.bf16.msra.mxu0 %v1372
        %1500 = vmatmul.bf16.gmra.mxu0 %v1285
        %v1501 = vpop.f32.mrf.mxu0
        %v1502 = vadd.f32 %v1320, %v1501
        %v1503 = vpop.f32.mrf.mxu0
        %v1504 = vadd.f32 %v1320, %v1503
        %1505 = vmatmul.bf16.gmra.mxu0 %v1286
        %v1506 = vpop.f32.mrf.mxu0
        %v1507 = vadd.f32 %v1320, %v1506
        %v1508 = vpop.f32.mrf.mxu0
        %v1509 = vadd.f32 %v1320, %v1508
        %1510 = vmatmul.bf16.gmra.mxu0 %v1287
        %v1511 = vpop.f32.mrf.mxu0
        %v1512 = vadd.f32 %v1320, %v1511
        %v1513 = vpop.f32.mrf.mxu0
        %v1514 = vadd.f32 %v1320, %v1513
        %1515 = vmatmul.bf16.gmra.mxu0 %v1288
        %v1516 = vpop.f32.mrf.mxu0
        %v1517 = vadd.f32 %v1320, %v1516
        %v1518 = vpop.f32.mrf.mxu0
        %v1519 = vadd.f32 %v1320, %v1518
        %1520 = vmatmul.bf16.gmra.mxu0 %v1289
        %v1521 = vpop.f32.mrf.mxu0
        %v1522 = vadd.f32 %v1320, %v1521
        %v1523 = vpop.f32.mrf.mxu0
        %v1524 = vadd.f32 %v1320, %v1523
        %1525 = vmatmul.bf16.gmra.mxu0 %v1290
        %v1526 = vpop.f32.mrf.mxu0
        %v1527 = vadd.f32 %v1320, %v1526
        %v1528 = vpop.f32.mrf.mxu0
        %v1529 = vadd.f32 %v1320, %v1528
        %1530 = vmatmul.bf16.gmra.mxu0 %v1291
        %v1531 = vpop.f32.mrf.mxu0
        %v1532 = vadd.f32 %v1320, %v1531
        %v1533 = vpop.f32.mrf.mxu0
        %v1534 = vadd.f32 %v1320, %v1533
        %1535 = vmatmul.bf16.gmra.mxu0 %v1292
        %v1536 = vpop.f32.mrf.mxu0
        %v1537 = vadd.f32 %v1320, %v1536
        %v1538 = vpop.f32.mrf.mxu0
        %v1539 = vadd.f32 %v1320, %v1538
        %1540 = vmatmul.bf16.gmra.mxu0 %v1293
        %v1541 = vpop.f32.mrf.mxu0
        %v1542 = vadd.f32 %v1320, %v1541
        %v1543 = vpop.f32.mrf.mxu0
        %v1544 = vadd.f32 %v1320, %v1543
        %1545 = vmatmul.bf16.gmra.mxu0 %v1294
        %v1546 = vpop.f32.mrf.mxu0
        %v1547 = vadd.f32 %v1320, %v1546
        %v1548 = vpop.f32.mrf.mxu0
        %v1549 = vadd.f32 %v1320, %v1548
        %1550 = vmatmul.bf16.gmra.mxu0 %v1295
        %v1551 = vpop.f32.mrf.mxu0
        %v1552 = vadd.f32 %v1320, %v1551
        %v1553 = vpop.f32.mrf.mxu0
        %v1554 = vadd.f32 %v1320, %v1553
        %1555 = vmatmul.bf16.gmra.mxu0 %v1296
        %v1556 = vpop.f32.mrf.mxu0
        %v1557 = vadd.f32 %v1320, %v1556
        %v1558 = vpop.f32.mrf.mxu0
        %v1559 = vadd.f32 %v1320, %v1558
        %1560 = vmatmul.bf16.gmra.mxu0 %v1297
        %v1561 = vpop.f32.mrf.mxu0
        %v1562 = vadd.f32 %v1320, %v1561
        %v1563 = vpop.f32.mrf.mxu0
        %v1564 = vadd.f32 %v1320, %v1563
        %1565 = vmatmul.bf16.gmra.mxu0 %v1298
        %v1566 = vpop.f32.mrf.mxu0
        %v1567 = vadd.f32 %v1320, %v1566
        %v1568 = vpop.f32.mrf.mxu0
        %v1569 = vadd.f32 %v1320, %v1568
        %1570 = vmatmul.bf16.gmra.mxu0 %v1299
        %v1571 = vpop.f32.mrf.mxu0
        %v1572 = vadd.f32 %v1320, %v1571
        %v1573 = vpop.f32.mrf.mxu0
        %v1574 = vadd.f32 %v1320, %v1573
        %1575 = vmatmul.bf16.gmra.mxu0 %v1300
        %v1576 = vpop.f32.mrf.mxu0
        %v1577 = vadd.f32 %v1320, %v1576
        %v1578 = vpop.f32.mrf.mxu0
        %v1579 = vadd.f32 %v1320, %v1578
        %1580 = vdwg.mxu0
        %1581 = vst [vmem:[%s434] sm:$0xff] %v1413
        %1582 = vst [vmem:[%s434 + $0x8] sm:$0xff] %v1502
        %1583 = vst [vmem:[%s434 + $0x10] sm:$0xff] %v1415
        %1584 = vst [vmem:[%s434 + $0x18] sm:$0xff] %v1504
        %1585 = vst [vmem:[%s434 + $0x20] sm:$0xff] %v1418
        %1586 = vst [vmem:[%s434 + $0x28] sm:$0xff] %v1507
        %1587 = vst [vmem:[%s434 + $0x30] sm:$0xff] %v1420
        %1588 = vst [vmem:[%s434 + $0x38] sm:$0xff] %v1509
        %1589 = vst [vmem:[%s434 + $0x40] sm:$0xff] %v1423
        %1590 = vst [vmem:[%s434 + $0x48] sm:$0xff] %v1512
        %1591 = vst [vmem:[%s434 + $0x50] sm:$0xff] %v1425
        %1592 = vst [vmem:[%s434 + $0x58] sm:$0xff] %v1514
        %1593 = vst [vmem:[%s434 + $0x60] sm:$0xff] %v1428
        %1594 = vst [vmem:[%s434 + $0x68] sm:$0xff] %v1517
        %1595 = vst [vmem:[%s434 + $0x70] sm:$0xff] %v1430
        %1596 = vst [vmem:[%s434 + $0x78] sm:$0xff] %v1519
        %1597 = vst [vmem:[%s434 + $0x80] sm:$0xff] %v1433
        %1598 = vst [vmem:[%s434 + $0x88] sm:$0xff] %v1522
        %1599 = vst [vmem:[%s434 + $0x90] sm:$0xff] %v1435
        %1600 = vst [vmem:[%s434 + $0x98] sm:$0xff] %v1524
        %1601 = vst [vmem:[%s434 + $0xa0] sm:$0xff] %v1438
        %1602 = vst [vmem:[%s434 + $0xa8] sm:$0xff] %v1527
        %1603 = vst [vmem:[%s434 + $0xb0] sm:$0xff] %v1440
        %1604 = vst [vmem:[%s434 + $0xb8] sm:$0xff] %v1529
        %1605 = vst [vmem:[%s434 + $0xc0] sm:$0xff] %v1443
        %1606 = vst [vmem:[%s434 + $0xc8] sm:$0xff] %v1532
        %1607 = vst [vmem:[%s434 + $0xd0] sm:$0xff] %v1445
        %1608 = vst [vmem:[%s434 + $0xd8] sm:$0xff] %v1534
        %1609 = vst [vmem:[%s434 + $0xe0] sm:$0xff] %v1448
        %1610 = vst [vmem:[%s434 + $0xe8] sm:$0xff] %v1537
        %1611 = vst [vmem:[%s434 + $0xf0] sm:$0xff] %v1450
        %1612 = vst [vmem:[%s434 + $0xf8] sm:$0xff] %v1539
        %1613 = vst [vmem:[%s434 + $0x100] sm:$0xff] %v1453
        %1614 = vst [vmem:[%s434 + $0x108] sm:$0xff] %v1542
        %1615 = vst [vmem:[%s434 + $0x110] sm:$0xff] %v1455
        %1616 = vst [vmem:[%s434 + $0x118] sm:$0xff] %v1544
        %1617 = vst [vmem:[%s434 + $0x120] sm:$0xff] %v1458
        %1618 = vst [vmem:[%s434 + $0x128] sm:$0xff] %v1547
        %1619 = vst [vmem:[%s434 + $0x130] sm:$0xff] %v1460
        %1620 = vst [vmem:[%s434 + $0x138] sm:$0xff] %v1549
        %1621 = vst [vmem:[%s434 + $0x140] sm:$0xff] %v1463
        %1622 = vst [vmem:[%s434 + $0x148] sm:$0xff] %v1552
        %1623 = vst [vmem:[%s434 + $0x150] sm:$0xff] %v1465
        %1624 = vst [vmem:[%s434 + $0x158] sm:$0xff] %v1554
        %1625 = vst [vmem:[%s434 + $0x160] sm:$0xff] %v1468
        %1626 = vst [vmem:[%s434 + $0x168] sm:$0xff] %v1557
        %1627 = vst [vmem:[%s434 + $0x170] sm:$0xff] %v1470
        %1628 = vst [vmem:[%s434 + $0x178] sm:$0xff] %v1559
        %1629 = vst [vmem:[%s434 + $0x180] sm:$0xff] %v1473
        %1630 = vst [vmem:[%s434 + $0x188] sm:$0xff] %v1562
        %1631 = vst [vmem:[%s434 + $0x190] sm:$0xff] %v1475
        %1632 = vst [vmem:[%s434 + $0x198] sm:$0xff] %v1564
        %1633 = vst [vmem:[%s434 + $0x1a0] sm:$0xff] %v1478
        %1634 = vst [vmem:[%s434 + $0x1a8] sm:$0xff] %v1567
        %1635 = vst [vmem:[%s434 + $0x1b0] sm:$0xff] %v1480
        %1636 = vst [vmem:[%s434 + $0x1b8] sm:$0xff] %v1569
        %1637 = vst [vmem:[%s434 + $0x1c0] sm:$0xff] %v1483
        %1638 = vst [vmem:[%s434 + $0x1c8] sm:$0xff] %v1572
        %1639 = vst [vmem:[%s434 + $0x1d0] sm:$0xff] %v1485
        %1640 = vst [vmem:[%s434 + $0x1d8] sm:$0xff] %v1574
        %1641 = vst [vmem:[%s434 + $0x1e0] sm:$0xff] %v1488
        %1642 = vst [vmem:[%s434 + $0x1e8] sm:$0xff] %v1577
        %1643 = vst [vmem:[%s434 + $0x1f0] sm:$0xff] %v1490
        %1644 = vst [vmem:[%s434 + $0x1f8] sm:$0xff] %v1579
        %s1645 = sand.u32 %s231, 1
        %s1646 = scalar_lea.sflag [#allocation4], %s1645
        %s1647 = sand.u32 %s231, 1
        %s1648 = smul.addr %s1647, 512
        %s1649 = scalar_lea.vmem [#allocation13], %s1648
        // Predicated region
        $region81: #{tpu_custom_call.1} parent=55 // pred_check
          %p1650 = pneg %p241
        $region82: #{tpu_custom_call.1} parent=55 // pred_check_branch
          %1652 = sbr.rel (%p1650) target = $region84
        $region83: #{tpu_custom_call.1} parent=55 // pred_region
          %s1653 = smul.u32 32, %s29
          %1655 = vsyncadd %s1646, 0
          %s1656 = smul.addr %s1653, 2
          %s1657 = smul.addr %s1656, 8
          %s1658 = scalar_lea.hbm %s9, %s1657
          %s1659 = sshll.u32 %s1649, 4
          %s1660 = int_to_ptr.vmem [resolvable:$true] %s1659
          %s1661 = sshll.u32 %s1658, 4
          %s1662 = int_to_ptr.hbm [resolvable:$true] %s1661
          %1667 = dma.vmem_to_hbm [thread:$0]  %s1660, 8192, %s1662, %s1646, 256, 256, 16
        $region84: #{tpu_custom_call.1} parent=55 // pred_fallthru
          _
      $region56: #{tpu_custom_call.1} parent=5 // pred_fallthru
        _
      %p1668 = scmp.le.s32.totalorder 2, %s24
      // Predicated region
      $region85: #{tpu_custom_call.1} parent=5 // pred_check
        %p1669 = pneg %p1668
      $region86: #{tpu_custom_call.1} parent=5 // pred_check_branch
        %1671 = sbr.rel (%p1669) target = $region88
      $region87: #{tpu_custom_call.1} parent=5 // pred_region
        %s1672 = ssub.s32 %s24, 2
        // Predicated region
        $region89: #{tpu_custom_call.1} parent=87 // pred_check
          %p1673 = pneg %p247
        $region90: #{tpu_custom_call.1} parent=87 // pred_check_branch
          %1675 = sbr.rel (%p1673) target = $region92
        $region91: #{tpu_custom_call.1} parent=87 // pred_region
          %s1676 = sand.u32 %s232, 1
          %s1677 = scalar_lea.sflag [#allocation4], %s1676
          %s1678 = sand.u32 %s232, 1
          %s1679 = smul.addr %s1678, 512
          %s1680 = scalar_lea.vmem [#allocation13], %s1679
          %1682 = dma.done %s1677, 8192
        $region92: #{tpu_custom_call.1} parent=87 // pred_fallthru
          _
      $region88: #{tpu_custom_call.1} parent=5 // pred_fallthru
        _
    $region6: #{tpu_custom_call.1} parent=1 // loop_footer
      %s28 = sadd.s32 1, %s24
    $region7: #{tpu_custom_call.1} parent=1 // loop_footer_branch
      %23 = sbr.rel target = $region3
    $region8: #{tpu_custom_call.1} parent=1 // loop_exit
      _
    %1683 = vsyncpa [#allocation3], 1
    %s1684 = scalar_lea.sflag [#allocation3], 1
    %1685 = vsyncpa %s1684, 1
    %1686 = vsyncpa [#allocation6], 1
    %1687 = vsyncpa [#allocation9], 1
    %1688 = vsyncpa [#allocation12], 1
    %1689 = vsyncpa [#allocation4], 1
    %s1690 = scalar_lea.sflag [#allocation4], 1
    %1691 = vsyncpa %s1690, 1

</llo_original>
